<compile_context>
chip_gen: v5e
topology: v5e:2x2
jax: 0.10.0
libtpu: 0.0.40
codegen_flags: <defaults>
</compile_context>

<pallas_src>
import functools

import jax
import jax.numpy as jnp
from jax import lax
from jax.experimental import pallas as pl
from jax.experimental.pallas import tpu as pltpu


def _layblock_cnn_kernel(inp_ref, gamma_ref, beta_ref, w_ref, b_ref,
                         out_ref, stat_ref, *, f_valid, kernel_size):
    # inp_ref : (Bt, S, Fp)   original input rows (one batch block)
    # gamma/beta/b_ref : (1, Fp)    LayerNorm affine params / conv bias
    # w_ref   : (K*Fp, Fp)    fused conv weight, row-block t = tap t, (in, out)
    # out_ref : (Bt, S, Fp)   residual output
    # stat_ref: (1, 1, Fp)    per-feature max of the activation in this block
    Bt, S, Fp = inp_ref.shape
    K = kernel_size
    PAD = (K - 1) // 2
    M = Bt * S

    x = inp_ref[...].astype(jnp.float32).reshape(M, Fp)     # (M, Fp) original input

    # ---- LayerNorm over the (valid) feature dim (torch.nn.LayerNorm, eps=1e-5) ----
    if f_valid == Fp:
        mean = jnp.mean(x, axis=-1, keepdims=True)
        cx = x - mean
    else:
        # padded feature lanes hold zeros: exclude them from the statistics
        fmask = lax.broadcasted_iota(jnp.int32, (1, Fp), 1) < f_valid
        mean = jnp.sum(x, axis=-1, keepdims=True) * (1.0 / f_valid)
        cx = jnp.where(fmask, x - mean, 0.0)
    var = jnp.sum(cx * cx, axis=-1, keepdims=True) * (1.0 / f_valid)
    ln = (cx * lax.rsqrt(var + 1e-5) * gamma_ref[...].astype(jnp.float32)
          + beta_ref[...].astype(jnp.float32))

    # single cast to the MXU dtype; roll/mask temporaries stay narrow
    ln_mx = ln.astype(w_ref.dtype)

    # (M, 1) sequence position of every flattened row: masks the zero padding at
    # the sequence edges and prevents taps leaking across batch rows (Bt > 1).
    if K > 1:
        s_idx = lax.broadcasted_iota(jnp.int32, (Bt, S, 1), 1).reshape(M, 1)

    # ---- 'valid' Conv1d over symmetric zero padding, as ONE fused matmul ----
    # Shifted views are formed in vregs with pltpu.roll (XLU) + lane-broadcast
    # edge masking, concatenated along lanes, and contracted in one MXU call.
    parts = []
    for t in range(K):                                       # K small & static
        d = t - PAD
        if d == 0:
            parts.append(ln_mx)
        else:
            rolled = pltpu.roll(ln_mx, shift=(-d) % M, axis=0)
            valid = jnp.logical_and(s_idx + d >= 0, s_idx + d < S)   # (M, 1)
            parts.append(jnp.where(valid, rolled, 0))
    lhs = parts[0] if K == 1 else jnp.concatenate(parts, axis=-1)    # (M, K*Fp)

    acc = jnp.dot(lhs, w_ref[...], preferred_element_type=jnp.float32)
    acc = acc + b_ref[...].astype(jnp.float32)               # conv bias

    # ---- ReLU + residual add of the original (pre-LN) input ----
    act = jnp.maximum(acc, 0.0)
    out_ref[...] = (act + x).reshape(Bt, S, Fp).astype(out_ref.dtype)

    # tiny monitoring stat: per-feature max of the activation in this block
    # ("ever activated" is decided in the wrapper; exact for any block size).
    stat_ref[...] = jnp.max(act, axis=0, keepdims=True).reshape(1, 1, Fp)


def _auto_batch_tile(B, S, target_m=512):
    """Fold batch rows into the matmul M dim, but keep >= 2 grid steps."""
    bt = min(B, max(1, target_m // max(S, 1)))
    while B % bt:
        bt -= 1
    while bt > 1 and B // bt < 2:        # keep DMA overlap / 2-TC sharding
        bt -= 1
        while B % bt:
            bt -= 1
    return bt


def lay_block_cnn(inp, gamma, beta, conv_w, conv_b, kernel_size, *,
                  batch_tile=None, mxu_dtype=jnp.bfloat16):
    """LayBlockCNN forward (padded=True, history=None, ReLU, eval mode).

    inp    : (B, S, F) channels-last
    conv_w : (F_out, F_in, K)  PyTorch Conv1d layout
    Returns {'out': (B,S,F), 'state': None, 'zsL': [(F,)]}.
    """
    B, S, F = inp.shape
    K = int(kernel_size)
    assert K % 2 == 1, "LayBlockCNN kernel_size cannot be an even number"

    # ---- lane-dense feature padding: F -> multiple of 128 ----
    pad_f = (-F) % 128
    Fp = F + pad_f
    if pad_f:
        inp_p = jnp.pad(inp, ((0, 0), (0, 0), (0, pad_f)))
        gamma_p = jnp.pad(gamma.reshape(F), (0, pad_f))
        beta_p = jnp.pad(beta.reshape(F), (0, pad_f))
        conv_w_p = jnp.pad(conv_w, ((0, pad_f), (0, pad_f), (0, 0)))
        conv_b_p = jnp.pad(conv_b.reshape(F), (0, pad_f))
    else:
        inp_p = inp
        gamma_p, beta_p = gamma.reshape(F), beta.reshape(F)
        conv_w_p, conv_b_p = conv_w, conv_b.reshape(F)

    # (O, I, K) -> (K, I, O) -> fused (K*Fp, Fp): out[s] += ln_pad[s+t] @ w[t].
    # Cast to the MXU dtype in the wrapper so the weight DMA shrinks.
    w_fused = (jnp.transpose(conv_w_p, (2, 1, 0))
               .reshape(K * Fp, Fp).astype(mxu_dtype))
    gamma2 = gamma_p.reshape(1, Fp).astype(jnp.float32)
    beta2 = beta_p.reshape(1, Fp).astype(jnp.float32)
    bias2 = conv_b_p.reshape(1, Fp).astype(jnp.float32)

    if batch_tile is None:
        batch_tile = _auto_batch_tile(B, S)
    assert B % batch_tile == 0
    nb = B // batch_tile
    M = batch_tile * S

    # ---- generation-aware VMEM budget (~85% of physical per-TC capacity) ----
    in_bytes = jnp.dtype(inp.dtype).itemsize
    w_bytes = jnp.dtype(mxu_dtype).itemsize
    work = M * Fp * (6 * 4 + (2 * K + 2) * w_bytes)         # f32 + narrow temps
    per_step = (4 * M * Fp * in_bytes                       # inp + out (x2 bufs)
                + 2 * K * Fp * Fp * w_bytes                 # fused weights (worst case)
                + 16 * Fp * 4                               # gamma/beta/bias/stat
                + work)
    try:
        vmem_cap = pltpu.get_tpu_info().vmem_capacity_bytes
    except Exception:
        vmem_cap = 64 << 20                                 # conservative fallback
    vmem_limit = int(min(max(int(1.25 * per_step), 4 << 20), int(0.85 * vmem_cap)))

    kernel = functools.partial(_layblock_cnn_kernel, f_valid=F, kernel_size=K)

    def _call(single_buffer_params):
        # grid-constant parameter blocks: drop the useless second pipeline buffer
        pm = ({"pipeline_mode": pl.Buffered(1)} if single_buffer_params else {})
        grid_spec = pltpu.PrefetchScalarGridSpec(
            num_scalar_prefetch=0,
            grid=(nb,),
            in_specs=[
                pl.BlockSpec((batch_tile, S, Fp), lambda b: (b, 0, 0)),   # inp
                pl.BlockSpec((1, Fp), lambda b: (0, 0), **pm),            # ln gamma
                pl.BlockSpec((1, Fp), lambda b: (0, 0), **pm),            # ln beta
                pl.BlockSpec((K * Fp, Fp), lambda b: (0, 0), **pm),        # conv w (fused)
                pl.BlockSpec((1, Fp), lambda b: (0, 0), **pm),            # conv bias
            ],
            out_specs=[pl.BlockSpec((batch_tile, S, Fp), lambda b: (b, 0, 0)),
                       pl.BlockSpec((1, 1, Fp), lambda b: (b, 0, 0))],
        )
        return pl.pallas_call(
            kernel,
            out_shape=(jax.ShapeDtypeStruct((B, S, Fp), inp.dtype),
                       jax.ShapeDtypeStruct((nb, 1, Fp), jnp.float32)),
            grid_spec=grid_spec,
            compiler_params=pltpu.CompilerParams(
                dimension_semantics=("parallel",),
                vmem_limit_bytes=vmem_limit),
        )(inp_p, gamma2, beta2, w_fused, bias2)

    try:
        out_p, act_max = _call(True)
    except Exception:
        # pipeline_mode=Buffered(1) unsupported on this jax/libtpu: default buffering
        out_p, act_max = _call(False)

    out = out_p[..., :F] if pad_f else out_p

    # torchness `zeroes`: per-feature flag == 1 iff the neuron never activated.
    total_max = jnp.max(act_max, axis=(0, 1))[:F]           # (F,)
    zsl = jnp.where(total_max > 0.0, 0.0, 1.0)

    return {'out': out, 'state': None, 'zsL': [zsl]}


def _reference(inp, gamma, beta, conv_w, conv_b, K):
    """Pure-JAX reference matching the PyTorch forward (NCL Conv1d)."""
    mean = jnp.mean(inp, axis=-1, keepdims=True)
    var = jnp.mean((inp - mean) ** 2, axis=-1, keepdims=True)
    ln = (inp - mean) / jnp.sqrt(var + 1e-5) * gamma + beta
    pad = (K - 1) // 2
    x = jnp.pad(ln, ((0, 0), (pad, pad), (0, 0)))
    x_ncl = jnp.transpose(x, (0, 2, 1))
    y = lax.conv_general_dilated(x_ncl, conv_w, window_strides=(1,),
                                 padding='VALID',
                                 dimension_numbers=('NCH', 'OIH', 'NCH'))
    y = jnp.transpose(y, (0, 2, 1)) + conv_b
    act = jnp.maximum(y, 0.0)
    return act + inp, act


if __name__ == "__main__":
    B, S, F, K = 2, 8, 32, 3          # batch, seq, n_filters, kernel_size (odd)

    key = jax.random.PRNGKey(0)
    k_inp, k_w, k_b = jax.random.split(key, 3)

    inp = jax.random.normal(k_inp, (B, S, F), dtype=jnp.float32)

    # deterministic parameter init (synthetic, not a checkpoint)
    gamma = jnp.ones((F,), jnp.float32)               # LayerNorm weight
    beta = jnp.zeros((F,), jnp.float32)               # LayerNorm bias
    conv_w = 0.1 * jax.random.normal(k_w, (F, F, K), dtype=jnp.float32)  # (O, I, K)
    conv_b = 0.1 * jax.random.normal(k_b, (F,), dtype=jnp.float32)

    ref_out, ref_act = _reference(inp, gamma, beta, conv_w, conv_b, K)
    ref_zsl = jnp.where(jnp.sum(ref_act > 0, axis=(0, 1)) == 0, 1.0, 0.0)

    # f32-MXU run: tight check vs the f32 reference (exact semantics)
    res32 = lay_block_cnn(inp, gamma, beta, conv_w, conv_b, K,
                          mxu_dtype=jnp.float32)
    out32 = jax.block_until_ready(res32['out'])
    assert out32.shape == (B, S, F)
    assert jnp.allclose(out32, ref_out, atol=1e-4, rtol=1e-4), "f32 mismatch vs reference"
    assert res32['state'] is None
    assert res32['zsL'][0].shape == (F,)
    assert jnp.array_equal(res32['zsL'][0], ref_zsl), "zsL mismatch"

    # default bf16-MXU run (perf path): tolerance appropriate for bf16 operands
    res = lay_block_cnn(inp, gamma, beta, conv_w, conv_b, K)
    out = jax.block_until_ready(res['out'])
    assert out.shape == (B, S, F)
    assert jnp.allclose(out, ref_out, atol=2e-2, rtol=2e-2), "bf16 mismatch vs reference"
    assert res['state'] is None
    assert res['zsL'][0].shape == (F,)

    print("KERNEL_OK")
</pallas_src>

<mosaic_0001>
module attributes {stable_mosaic.version = 11 : i64} {
  func.func @_layblock_cnn_kernel(%arg0: i32, %arg1: memref<1x8x128xf32, #tpu.memory_space<vmem>>, %arg2: memref<1x128xf32, #tpu.memory_space<vmem>>, %arg3: memref<1x128xf32, #tpu.memory_space<vmem>>, %arg4: memref<384x128xf32, #tpu.memory_space<vmem>>, %arg5: memref<1x128xf32, #tpu.memory_space<vmem>>, %arg6: memref<1x8x128xf32, #tpu.memory_space<vmem>>, %arg7: memref<1x1x128xf32, #tpu.memory_space<vmem>>) attributes {dimension_semantics = [#tpu.dimension_semantics<parallel>], iteration_bounds = array<i64: 2>, scalar_prefetch = 0 : i64, scratch_operands = 0 : i64, tpu.core_type = #tpu.core_type<tc>, window_params = [{transform_indices = @transform_0, window_bounds = array<i64: 1, 8, 128>}, {pipeline_mode = #tpu.pipeline_mode<synchronous>, transform_indices = @transform_1, window_bounds = array<i64: 1, 128>}, {pipeline_mode = #tpu.pipeline_mode<synchronous>, transform_indices = @transform_2, window_bounds = array<i64: 1, 128>}, {pipeline_mode = #tpu.pipeline_mode<synchronous>, transform_indices = @transform_3, window_bounds = array<i64: 384, 128>}, {pipeline_mode = #tpu.pipeline_mode<synchronous>, transform_indices = @transform_4, window_bounds = array<i64: 1, 128>}, {transform_indices = @transform_5, window_bounds = array<i64: 1, 8, 128>}, {transform_indices = @transform_6, window_bounds = array<i64: 1, 1, 128>}]} {
    %c0 = arith.constant 0 : index
    %c0_0 = arith.constant 0 : index
    %c0_1 = arith.constant 0 : index
    %0 = vector.load %arg1[%c0, %c0_0, %c0_1] : memref<1x8x128xf32, #tpu.memory_space<vmem>>, vector<1x8x128xf32>
    %1 = vector.shape_cast %0 : vector<1x8x128xf32> to vector<8x128xf32>
    %2 = tpu.iota {dimensions = array<i32: 1>} : vector<1x128xi32>
    %c32_i32 = arith.constant 32 : i32
    %3 = vector.broadcast %c32_i32 : i32 to vector<1x128xi32>
    %4 = arith.cmpi slt, %2, %3 : vector<1x128xi32>
    %cst = arith.constant dense<0.000000e+00> : vector<8xf32>
    %5 = vector.multi_reduction <add>, %1, %cst [1] : vector<8x128xf32> to vector<8xf32>
    %6 = vector.shape_cast %5 : vector<8xf32> to vector<8x1xf32>
    %cst_2 = arith.constant 3.125000e-02 : f32
    %7 = vector.broadcast %cst_2 : f32 to vector<8x1xf32>
    %8 = arith.mulf %6, %7 : vector<8x1xf32>
    %9 = vector.broadcast %8 : vector<8x1xf32> to vector<8x128xf32>
    %10 = arith.subf %1, %9 : vector<8x128xf32>
    %cst_3 = arith.constant 0.000000e+00 : f32
    %11 = vector.shape_cast %4 : vector<1x128xi1> to vector<1x128xi1>
    %12 = vector.broadcast %11 : vector<1x128xi1> to vector<8x128xi1>
    %13 = vector.broadcast %cst_3 : f32 to vector<8x128xf32>
    %14 = arith.select %12, %10, %13 : vector<8x128xi1>, vector<8x128xf32>
    %15 = arith.mulf %14, %14 : vector<8x128xf32>
    %cst_4 = arith.constant dense<0.000000e+00> : vector<8xf32>
    %16 = vector.multi_reduction <add>, %15, %cst_4 [1] : vector<8x128xf32> to vector<8xf32>
    %17 = vector.shape_cast %16 : vector<8xf32> to vector<8x1xf32>
    %cst_5 = arith.constant 3.125000e-02 : f32
    %18 = vector.broadcast %cst_5 : f32 to vector<8x1xf32>
    %19 = arith.mulf %17, %18 : vector<8x1xf32>
    %cst_6 = arith.constant 9.99999974E-6 : f32
    %20 = vector.broadcast %cst_6 : f32 to vector<8x1xf32>
    %21 = arith.addf %19, %20 : vector<8x1xf32>
    %22 = math.rsqrt %21 : vector<8x1xf32>
    %23 = vector.broadcast %22 : vector<8x1xf32> to vector<8x128xf32>
    %24 = arith.mulf %14, %23 : vector<8x128xf32>
    %c0_7 = arith.constant 0 : index
    %c0_8 = arith.constant 0 : index
    %25 = vector.load %arg2[%c0_7, %c0_8] : memref<1x128xf32, #tpu.memory_space<vmem>>, vector<1x128xf32>
    %26 = vector.broadcast %25 : vector<1x128xf32> to vector<8x128xf32>
    %27 = arith.mulf %24, %26 : vector<8x128xf32>
    %c0_9 = arith.constant 0 : index
    %c0_10 = arith.constant 0 : index
    %28 = vector.load %arg3[%c0_9, %c0_10] : memref<1x128xf32, #tpu.memory_space<vmem>>, vector<1x128xf32>
    %29 = vector.broadcast %28 : vector<1x128xf32> to vector<8x128xf32>
    %30 = arith.addf %27, %29 : vector<8x128xf32>
    %31 = tpu.iota {dimensions = array<i32: 1>} : vector<1x8x1xi32>
    %32 = vector.shape_cast %31 : vector<1x8x1xi32> to vector<8x1xi32>
    %c1_i32 = arith.constant 1 : i32
    %33 = tpu.dynamic_rotate %30 by %c1_i32 dim 0 : vector<8x128xf32>, i32 -> vector<8x128xf32>
    %c-1_i32 = arith.constant -1 : i32
    %34 = vector.broadcast %c-1_i32 : i32 to vector<8x1xi32>
    %35 = arith.addi %32, %34 : vector<8x1xi32>
    %c0_i32 = arith.constant 0 : i32
    %36 = vector.broadcast %c0_i32 : i32 to vector<8x1xi32>
    %37 = arith.cmpi sge, %35, %36 : vector<8x1xi32>
    %c-1_i32_11 = arith.constant -1 : i32
    %38 = vector.broadcast %c-1_i32_11 : i32 to vector<8x1xi32>
    %39 = arith.addi %32, %38 : vector<8x1xi32>
    %c8_i32 = arith.constant 8 : i32
    %40 = vector.broadcast %c8_i32 : i32 to vector<8x1xi32>
    %41 = arith.cmpi slt, %39, %40 : vector<8x1xi32>
    %42 = arith.andi %37, %41 : vector<8x1xi1>
    %c0_i32_12 = arith.constant 0 : i32
    %43 = arith.sitofp %c0_i32_12 : i32 to f32
    %44 = vector.shape_cast %42 : vector<8x1xi1> to vector<8x1xi1>
    %45 = vector.broadcast %44 : vector<8x1xi1> to vector<8x128xi1>
    %46 = vector.broadcast %43 : f32 to vector<8x128xf32>
    %47 = arith.select %45, %33, %46 : vector<8x128xi1>, vector<8x128xf32>
    %c7_i32 = arith.constant 7 : i32
    %48 = tpu.dynamic_rotate %30 by %c7_i32 dim 0 : vector<8x128xf32>, i32 -> vector<8x128xf32>
    %c1_i32_13 = arith.constant 1 : i32
    %49 = vector.broadcast %c1_i32_13 : i32 to vector<8x1xi32>
    %50 = arith.addi %32, %49 : vector<8x1xi32>
    %c0_i32_14 = arith.constant 0 : i32
    %51 = vector.broadcast %c0_i32_14 : i32 to vector<8x1xi32>
    %52 = arith.cmpi sge, %50, %51 : vector<8x1xi32>
    %c1_i32_15 = arith.constant 1 : i32
    %53 = vector.broadcast %c1_i32_15 : i32 to vector<8x1xi32>
    %54 = arith.addi %32, %53 : vector<8x1xi32>
    %c8_i32_16 = arith.constant 8 : i32
    %55 = vector.broadcast %c8_i32_16 : i32 to vector<8x1xi32>
    %56 = arith.cmpi slt, %54, %55 : vector<8x1xi32>
    %57 = arith.andi %52, %56 : vector<8x1xi1>
    %c0_i32_17 = arith.constant 0 : i32
    %58 = arith.sitofp %c0_i32_17 : i32 to f32
    %59 = vector.shape_cast %57 : vector<8x1xi1> to vector<8x1xi1>
    %60 = vector.broadcast %59 : vector<8x1xi1> to vector<8x128xi1>
    %61 = vector.broadcast %58 : f32 to vector<8x128xf32>
    %62 = arith.select %60, %48, %61 : vector<8x128xi1>, vector<8x128xf32>
    %63 = tpu.concatenate %47, %30, %62 in 1 : vector<8x128xf32>, vector<8x128xf32>, vector<8x128xf32> -> vector<8x384xf32>
    %c0_18 = arith.constant 0 : index
    %c0_19 = arith.constant 0 : index
    %64 = vector.load %arg4[%c0_18, %c0_19] : memref<384x128xf32, #tpu.memory_space<vmem>>, vector<384x128xf32>
    %cst_20 = arith.constant dense<0.000000e+00> : vector<8x128xf32>
    %65 = tpu.matmul %63, %64, %cst_20 {dimension_numbers = #tpu.dot_dimension_numbers<[1], [0], [0], [1], [0, 0, 1, 1], [], []>} : vector<8x384xf32>, vector<384x128xf32>, vector<8x128xf32> -> vector<8x128xf32>
    %c0_21 = arith.constant 0 : index
    %c0_22 = arith.constant 0 : index
    %66 = vector.load %arg5[%c0_21, %c0_22] : memref<1x128xf32, #tpu.memory_space<vmem>>, vector<1x128xf32>
    %67 = vector.broadcast %66 : vector<1x128xf32> to vector<8x128xf32>
    %68 = arith.addf %65, %67 : vector<8x128xf32>
    %cst_23 = arith.constant 0.000000e+00 : f32
    %69 = vector.broadcast %cst_23 : f32 to vector<8x128xf32>
    %70 = arith.maximumf %68, %69 : vector<8x128xf32>
    %71 = arith.addf %70, %1 : vector<8x128xf32>
    %72 = vector.shape_cast %71 : vector<8x128xf32> to vector<1x8x128xf32>
    %c0_24 = arith.constant 0 : index
    %c0_25 = arith.constant 0 : index
    %c0_26 = arith.constant 0 : index
    %73 = vector.load %arg6[%c0_24, %c0_25, %c0_26] : memref<1x8x128xf32, #tpu.memory_space<vmem>>, vector<1x8x128xf32>
    tpu.vector_store %arg6[%c0_24, %c0_25, %c0_26], %72 {strides = array<i32>} : memref<1x8x128xf32, #tpu.memory_space<vmem>>, vector<1x8x128xf32>,
    %cst_27 = arith.constant dense<0xFF800000> : vector<128xf32>
    %74 = vector.multi_reduction <maximumf>, %70, %cst_27 [0] : vector<8x128xf32> to vector<128xf32>
    %75 = vector.shape_cast %74 : vector<128xf32> to vector<1x128xf32>
    %76 = vector.shape_cast %75 : vector<1x128xf32> to vector<1x1x128xf32>
    %c0_28 = arith.constant 0 : index
    %c0_29 = arith.constant 0 : index
    %c0_30 = arith.constant 0 : index
    %77 = vector.load %arg7[%c0_28, %c0_29, %c0_30] : memref<1x1x128xf32, #tpu.memory_space<vmem>>, vector<1x1x128xf32>
    tpu.vector_store %arg7[%c0_28, %c0_29, %c0_30], %76 {strides = array<i32>} : memref<1x1x128xf32, #tpu.memory_space<vmem>>, vector<1x1x128xf32>,
    return
  }
  func.func @transform_0(%arg0: i32) -> (i32, i32, i32) {
    %c0_i32 = arith.constant 0 : i32
    %c0_i32_0 = arith.constant 0 : i32
    %c0_i32_1 = arith.constant 0 : i32
    return %arg0, %c0_i32, %c0_i32_0 : i32, i32, i32
  }
  func.func @transform_1(%arg0: i32) -> (i32, i32) {
    %c0_i32 = arith.constant 0 : i32
    %c0_i32_0 = arith.constant 0 : i32
    %c0_i32_1 = arith.constant 0 : i32
    return %c0_i32, %c0_i32_0 : i32, i32
  }
  func.func @transform_2(%arg0: i32) -> (i32, i32) {
    %c0_i32 = arith.constant 0 : i32
    %c0_i32_0 = arith.constant 0 : i32
    %c0_i32_1 = arith.constant 0 : i32
    return %c0_i32, %c0_i32_0 : i32, i32
  }
  func.func @transform_3(%arg0: i32) -> (i32, i32) {
    %c0_i32 = arith.constant 0 : i32
    %c0_i32_0 = arith.constant 0 : i32
    %c0_i32_1 = arith.constant 0 : i32
    return %c0_i32, %c0_i32_0 : i32, i32
  }
  func.func @transform_4(%arg0: i32) -> (i32, i32) {
    %c0_i32 = arith.constant 0 : i32
    %c0_i32_0 = arith.constant 0 : i32
    %c0_i32_1 = arith.constant 0 : i32
    return %c0_i32, %c0_i32_0 : i32, i32
  }
  func.func @transform_5(%arg0: i32) -> (i32, i32, i32) {
    %c0_i32 = arith.constant 0 : i32
    %c0_i32_0 = arith.constant 0 : i32
    %c0_i32_1 = arith.constant 0 : i32
    return %arg0, %c0_i32, %c0_i32_0 : i32, i32, i32
  }
  func.func @transform_6(%arg0: i32) -> (i32, i32, i32) {
    %c0_i32 = arith.constant 0 : i32
    %c0_i32_0 = arith.constant 0 : i32
    %c0_i32_1 = arith.constant 0 : i32
    return %arg0, %c0_i32, %c0_i32_0 : i32, i32, i32
  }
}

module attributes {stable_mosaic.version = 11 : i64} {
  func.func @_layblock_cnn_kernel(%arg0: i32, %arg1: memref<1x8x128xf32, #tpu.memory_space<vmem>>, %arg2: memref<1x128xf32, #tpu.memory_space<vmem>>, %arg3: memref<1x128xf32, #tpu.memory_space<vmem>>, %arg4: memref<384x128xf32, #tpu.memory_space<vmem>>, %arg5: memref<1x128xf32, #tpu.memory_space<vmem>>, %arg6: memref<1x8x128xf32, #tpu.memory_space<vmem>>, %arg7: memref<1x1x128xf32, #tpu.memory_space<vmem>>) attributes {dimension_semantics = [#tpu.dimension_semantics<parallel>], iteration_bounds = array<i64: 2>, scalar_prefetch = 0 : i64, scratch_operands = 0 : i64, tpu.core_type = #tpu.core_type<tc>, window_params = [{transform_indices = @transform_0, window_bounds = array<i64: 1, 8, 128>}, {pipeline_mode = #tpu.pipeline_mode<synchronous>, transform_indices = @transform_1, window_bounds = array<i64: 1, 128>}, {pipeline_mode = #tpu.pipeline_mode<synchronous>, transform_indices = @transform_2, window_bounds = array<i64: 1, 128>}, {pipeline_mode = #tpu.pipeline_mode<synchronous>, transform_indices = @transform_3, window_bounds = array<i64: 384, 128>}, {pipeline_mode = #tpu.pipeline_mode<synchronous>, transform_indices = @transform_4, window_bounds = array<i64: 1, 128>}, {transform_indices = @transform_5, window_bounds = array<i64: 1, 8, 128>}, {transform_indices = @transform_6, window_bounds = array<i64: 1, 1, 128>}]} {
    %c0 = arith.constant 0 : index
    %c0_0 = arith.constant 0 : index
    %c0_1 = arith.constant 0 : index
    %0 = vector.load %arg1[%c0, %c0_0, %c0_1] : memref<1x8x128xf32, #tpu.memory_space<vmem>>, vector<1x8x128xf32>
    %1 = vector.shape_cast %0 : vector<1x8x128xf32> to vector<8x128xf32>
    %2 = tpu.iota {dimensions = array<i32: 1>} : vector<1x128xi32>
    %c32_i32 = arith.constant 32 : i32
    %3 = vector.broadcast %c32_i32 : i32 to vector<1x128xi32>
    %4 = arith.cmpi slt, %2, %3 : vector<1x128xi32>
    %cst = arith.constant dense<0.000000e+00> : vector<8xf32>
    %5 = vector.multi_reduction <add>, %1, %cst [1] : vector<8x128xf32> to vector<8xf32>
    %6 = vector.shape_cast %5 : vector<8xf32> to vector<8x1xf32>
    %cst_2 = arith.constant 3.125000e-02 : f32
    %7 = vector.broadcast %cst_2 : f32 to vector<8x1xf32>
    %8 = arith.mulf %6, %7 : vector<8x1xf32>
    %9 = vector.broadcast %8 : vector<8x1xf32> to vector<8x128xf32>
    %10 = arith.subf %1, %9 : vector<8x128xf32>
    %cst_3 = arith.constant 0.000000e+00 : f32
    %11 = vector.shape_cast %4 : vector<1x128xi1> to vector<1x128xi1>
    %12 = vector.broadcast %11 : vector<1x128xi1> to vector<8x128xi1>
    %13 = vector.broadcast %cst_3 : f32 to vector<8x128xf32>
    %14 = arith.select %12, %10, %13 : vector<8x128xi1>, vector<8x128xf32>
    %15 = arith.mulf %14, %14 : vector<8x128xf32>
    %cst_4 = arith.constant dense<0.000000e+00> : vector<8xf32>
    %16 = vector.multi_reduction <add>, %15, %cst_4 [1] : vector<8x128xf32> to vector<8xf32>
    %17 = vector.shape_cast %16 : vector<8xf32> to vector<8x1xf32>
    %cst_5 = arith.constant 3.125000e-02 : f32
    %18 = vector.broadcast %cst_5 : f32 to vector<8x1xf32>
    %19 = arith.mulf %17, %18 : vector<8x1xf32>
    %cst_6 = arith.constant 9.99999974E-6 : f32
    %20 = vector.broadcast %cst_6 : f32 to vector<8x1xf32>
    %21 = arith.addf %19, %20 : vector<8x1xf32>
    %22 = math.rsqrt %21 : vector<8x1xf32>
    %23 = vector.broadcast %22 : vector<8x1xf32> to vector<8x128xf32>
    %24 = arith.mulf %14, %23 : vector<8x128xf32>
    %c0_7 = arith.constant 0 : index
    %c0_8 = arith.constant 0 : index
    %25 = vector.load %arg2[%c0_7, %c0_8] : memref<1x128xf32, #tpu.memory_space<vmem>>, vector<1x128xf32>
    %26 = vector.broadcast %25 : vector<1x128xf32> to vector<8x128xf32>
    %27 = arith.mulf %24, %26 : vector<8x128xf32>
    %c0_9 = arith.constant 0 : index
    %c0_10 = arith.constant 0 : index
    %28 = vector.load %arg3[%c0_9, %c0_10] : memref<1x128xf32, #tpu.memory_space<vmem>>, vector<1x128xf32>
    %29 = vector.broadcast %28 : vector<1x128xf32> to vector<8x128xf32>
    %30 = arith.addf %27, %29 : vector<8x128xf32>
    %31 = tpu.iota {dimensions = array<i32: 1>} : vector<1x8x1xi32>
    %32 = vector.shape_cast %31 : vector<1x8x1xi32> to vector<8x1xi32>
    %c1_i32 = arith.constant 1 : i32
    %33 = tpu.dynamic_rotate %30 by %c1_i32 dim 0 : vector<8x128xf32>, i32 -> vector<8x128xf32>
    %c-1_i32 = arith.constant -1 : i32
    %34 = vector.broadcast %c-1_i32 : i32 to vector<8x1xi32>
    %35 = arith.addi %32, %34 : vector<8x1xi32>
    %c0_i32 = arith.constant 0 : i32
    %36 = vector.broadcast %c0_i32 : i32 to vector<8x1xi32>
    %37 = arith.cmpi sge, %35, %36 : vector<8x1xi32>
    %c-1_i32_11 = arith.constant -1 : i32
    %38 = vector.broadcast %c-1_i32_11 : i32 to vector<8x1xi32>
    %39 = arith.addi %32, %38 : vector<8x1xi32>
    %c8_i32 = arith.constant 8 : i32
    %40 = vector.broadcast %c8_i32 : i32 to vector<8x1xi32>
    %41 = arith.cmpi slt, %39, %40 : vector<8x1xi32>
    %42 = arith.andi %37, %41 : vector<8x1xi1>
    %c0_i32_12 = arith.constant 0 : i32
    %43 = arith.sitofp %c0_i32_12 : i32 to f32
    %44 = vector.shape_cast %42 : vector<8x1xi1> to vector<8x1xi1>
    %45 = vector.broadcast %44 : vector<8x1xi1> to vector<8x128xi1>
    %46 = vector.broadcast %43 : f32 to vector<8x128xf32>
    %47 = arith.select %45, %33, %46 : vector<8x128xi1>, vector<8x128xf32>
    %c7_i32 = arith.constant 7 : i32
    %48 = tpu.dynamic_rotate %30 by %c7_i32 dim 0 : vector<8x128xf32>, i32 -> vector<8x128xf32>
    %c1_i32_13 = arith.constant 1 : i32
    %49 = vector.broadcast %c1_i32_13 : i32 to vector<8x1xi32>
    %50 = arith.addi %32, %49 : vector<8x1xi32>
    %c0_i32_14 = arith.constant 0 : i32
    %51 = vector.broadcast %c0_i32_14 : i32 to vector<8x1xi32>
    %52 = arith.cmpi sge, %50, %51 : vector<8x1xi32>
    %c1_i32_15 = arith.constant 1 : i32
    %53 = vector.broadcast %c1_i32_15 : i32 to vector<8x1xi32>
    %54 = arith.addi %32, %53 : vector<8x1xi32>
    %c8_i32_16 = arith.constant 8 : i32
    %55 = vector.broadcast %c8_i32_16 : i32 to vector<8x1xi32>
    %56 = arith.cmpi slt, %54, %55 : vector<8x1xi32>
    %57 = arith.andi %52, %56 : vector<8x1xi1>
    %c0_i32_17 = arith.constant 0 : i32
    %58 = arith.sitofp %c0_i32_17 : i32 to f32
    %59 = vector.shape_cast %57 : vector<8x1xi1> to vector<8x1xi1>
    %60 = vector.broadcast %59 : vector<8x1xi1> to vector<8x128xi1>
    %61 = vector.broadcast %58 : f32 to vector<8x128xf32>
    %62 = arith.select %60, %48, %61 : vector<8x128xi1>, vector<8x128xf32>
    %63 = tpu.concatenate %47, %30, %62 in 1 : vector<8x128xf32>, vector<8x128xf32>, vector<8x128xf32> -> vector<8x384xf32>
    %c0_18 = arith.constant 0 : index
    %c0_19 = arith.constant 0 : index
    %64 = vector.load %arg4[%c0_18, %c0_19] : memref<384x128xf32, #tpu.memory_space<vmem>>, vector<384x128xf32>
    %cst_20 = arith.constant dense<0.000000e+00> : vector<8x128xf32>
    %65 = tpu.matmul %63, %64, %cst_20 {dimension_numbers = #tpu.dot_dimension_numbers<[1], [0], [0], [1], [0, 0, 1, 1], [], []>} : vector<8x384xf32>, vector<384x128xf32>, vector<8x128xf32> -> vector<8x128xf32>
    %c0_21 = arith.constant 0 : index
    %c0_22 = arith.constant 0 : index
    %66 = vector.load %arg5[%c0_21, %c0_22] : memref<1x128xf32, #tpu.memory_space<vmem>>, vector<1x128xf32>
    %67 = vector.broadcast %66 : vector<1x128xf32> to vector<8x128xf32>
    %68 = arith.addf %65, %67 : vector<8x128xf32>
    %cst_23 = arith.constant 0.000000e+00 : f32
    %69 = vector.broadcast %cst_23 : f32 to vector<8x128xf32>
    %70 = arith.maximumf %68, %69 : vector<8x128xf32>
    %71 = arith.addf %70, %1 : vector<8x128xf32>
    %72 = vector.shape_cast %71 : vector<8x128xf32> to vector<1x8x128xf32>
    %c0_24 = arith.constant 0 : index
    %c0_25 = arith.constant 0 : index
    %c0_26 = arith.constant 0 : index
    %73 = vector.load %arg6[%c0_24, %c0_25, %c0_26] : memref<1x8x128xf32, #tpu.memory_space<vmem>>, vector<1x8x128xf32>
    tpu.vector_store %arg6[%c0_24, %c0_25, %c0_26], %72 {strides = array<i32>} : memref<1x8x128xf32, #tpu.memory_space<vmem>>, vector<1x8x128xf32>,
    %cst_27 = arith.constant dense<0xFF800000> : vector<128xf32>
    %74 = vector.multi_reduction <maximumf>, %70, %cst_27 [0] : vector<8x128xf32> to vector<128xf32>
    %75 = vector.shape_cast %74 : vector<128xf32> to vector<1x128xf32>
    %76 = vector.shape_cast %75 : vector<1x128xf32> to vector<1x1x128xf32>
    %c0_28 = arith.constant 0 : index
    %c0_29 = arith.constant 0 : index
    %c0_30 = arith.constant 0 : index
    %77 = vector.load %arg7[%c0_28, %c0_29, %c0_30] : memref<1x1x128xf32, #tpu.memory_space<vmem>>, vector<1x1x128xf32>
    tpu.vector_store %arg7[%c0_28, %c0_29, %c0_30], %76 {strides = array<i32>} : memref<1x1x128xf32, #tpu.memory_space<vmem>>, vector<1x1x128xf32>,
    return
  }
  func.func @transform_0(%arg0: i32) -> (i32, i32, i32) {
    %c0_i32 = arith.constant 0 : i32
    %c0_i32_0 = arith.constant 0 : i32
    %c0_i32_1 = arith.constant 0 : i32
    return %arg0, %c0_i32, %c0_i32_0 : i32, i32, i32
  }
  func.func @transform_1(%arg0: i32) -> (i32, i32) {
    %c0_i32 = arith.constant 0 : i32
    %c0_i32_0 = arith.constant 0 : i32
    %c0_i32_1 = arith.constant 0 : i32
    return %c0_i32, %c0_i32_0 : i32, i32
  }
  func.func @transform_2(%arg0: i32) -> (i32, i32) {
    %c0_i32 = arith.constant 0 : i32
    %c0_i32_0 = arith.constant 0 : i32
    %c0_i32_1 = arith.constant 0 : i32
    return %c0_i32, %c0_i32_0 : i32, i32
  }
  func.func @transform_3(%arg0: i32) -> (i32, i32) {
    %c0_i32 = arith.constant 0 : i32
    %c0_i32_0 = arith.constant 0 : i32
    %c0_i32_1 = arith.constant 0 : i32
    return %c0_i32, %c0_i32_0 : i32, i32
  }
  func.func @transform_4(%arg0: i32) -> (i32, i32) {
    %c0_i32 = arith.constant 0 : i32
    %c0_i32_0 = arith.constant 0 : i32
    %c0_i32_1 = arith.constant 0 : i32
    return %c0_i32, %c0_i32_0 : i32, i32
  }
  func.func @transform_5(%arg0: i32) -> (i32, i32, i32) {
    %c0_i32 = arith.constant 0 : i32
    %c0_i32_0 = arith.constant 0 : i32
    %c0_i32_1 = arith.constant 0 : i32
    return %arg0, %c0_i32, %c0_i32_0 : i32, i32, i32
  }
  func.func @transform_6(%arg0: i32) -> (i32, i32, i32) {
    %c0_i32 = arith.constant 0 : i32
    %c0_i32_0 = arith.constant 0 : i32
    %c0_i32_1 = arith.constant 0 : i32
    return %arg0, %c0_i32, %c0_i32_0 : i32, i32, i32
  }
}

</mosaic_0001>

<llo_original>
// kernel: tpu_custom_call.1
$region0: #{tpu_custom_call.1}
  #allocation0 [shape = 'u32[]', space=smem, size = 0x4, offset = 0x4, fixed_abs, tag = 'smem constant byte address 0x4 - core index']
  #allocation1 [shape = 'u32[72,128]{1,0:T(1,128)}', space=vmem, size = 0x9000, scoped, tag = 'internal scratch']
  %s0 = inlined_call_operand.hbm [shape: f32[2,8,128], index: 0, kind: input, shape index: {}]
  %s1 = inlined_call_operand.hbm [shape: f32[1,128], index: 1, kind: input, shape index: {}]
  %s2 = inlined_call_operand.vmem [shape: f32[1,128], index: 2, kind: input, shape index: {}]
  %s3 = inlined_call_operand.hbm [shape: f32[384,128], index: 3, kind: input, shape index: {}]
  %s4 = inlined_call_operand.vmem [shape: f32[1,128], index: 4, kind: input, shape index: {}]
  %s5 = inlined_call_operand.hbm [shape: f32[2,8,128], index: 5, kind: output, shape index: {0}]
  %s6 = inlined_call_operand.hbm [shape: f32[2,1,128], index: 6, kind: output, shape index: {1}]
  %7 = xla_tuple %s5, %s6
  %s8 = sld [smem:[#allocation0]]
  $region73: #{tpu_custom_call.1} parent=0
    _
  %s10 = ssub.s32 1, %s8
  %s11 = scalar_select 0, %s10, %s8
  $region1: #{tpu_custom_call.1} parent=0
    #allocation2 [shape = 'u8[8192]{0}', space=vmem, size = 0x2000, scoped, tag = 'input window, operand 0']
    #allocation3 [shape = 's32[2]{0}', space=sflag, size = 0x8, scoped, tag = 'scoped memory for tpu_custom_call.1']
    #allocation4 [shape = 's32[2]{0}', space=sflag, size = 0x8, scoped, tag = 'scoped memory for tpu_custom_call.1']
    #allocation5 [shape = 'u8[512]{0}', space=vmem, size = 0x400, scoped, tag = 'input window, operand 1, single buffered']
    #allocation6 [shape = 's32[1]{0}', space=sflag, size = 0x4, scoped, tag = 'scoped memory for tpu_custom_call.1']
    #allocation7 [shape = 'u8[196608]{0}', space=vmem, size = 0x30000, scoped, tag = 'input window, operand 3, single buffered']
    #allocation8 [shape = 'u8[8192]{0}', space=vmem, size = 0x2000, scoped, tag = 'output window, operand 0']
    #allocation9 [shape = 'u8[1024]{0}', space=vmem, size = 0x400, scoped, tag = 'output window, operand 1']
    #allocation10 [shape = 's32[2]{0}', space=sflag, size = 0x8, scoped, tag = 'scoped memory for tpu_custom_call.1']
    %12 = vsyncpa [#allocation3], 0
    %s13 = scalar_lea.sflag [#allocation3], 1
    %14 = vsyncpa %s13, 0
    %15 = vsyncpa [#allocation6], 0
    %16 = vsyncpa [#allocation4], 0
    %s17 = scalar_lea.sflag [#allocation4], 1
    %18 = vsyncpa %s17, 0
    %19 = vsyncpa [#allocation10], 0
    %s20 = scalar_lea.sflag [#allocation10], 1
    %21 = vsyncpa %s20, 0
    loop: start=0, step=1, limit=4
    $region2: #{tpu_custom_call.1} parent=1 // loop_pre_header
      _
    $region3: #{tpu_custom_call.1} parent=1 // loop_header
      %s23 = sphi 0, %s27
      %p24 = scmp.ge.s32.totalorder %s23, 4
      %s33 = sphi 0, %s35
      %s36 = sphi 0, %s33
      %s37 = sphi 0, %s36
      %s53 = sphi 0, %s37
      %s57 = sphi 0, %s57
      %s59 = sphi 0, %s57
      %s60 = sphi 0, %s59
      %s74 = sphi 0, %s60
      %s78 = sphi 0, %s78
      %s80 = sphi 0, %s78
      %s81 = sphi 0, %s80
      %s95 = sphi 0, %s81
      %s99 = sphi 0, %s99
      %s101 = sphi 0, %s99
      %s102 = sphi 0, %s101
      %s116 = sphi 0, %s102
      %s120 = sphi 0, %s120
      %s122 = sphi 0, %s120
      %s123 = sphi 0, %s122
      %s137 = sphi 0, %s123
      %s143 = sphi 0, %s145
      %s146 = sphi 0, %s143
      %s147 = sphi 0, %s146
      %s163 = sphi 0, %s147
      %s169 = sphi 0, %s171
      %s172 = sphi 0, %s169
      %s173 = sphi 0, %s172
      %s189 = sphi 0, %s173
    $region4: #{tpu_custom_call.1} parent=1 // loop_header_branch
      %26 = sbr.rel (%p24) target = $region8
    $region5: #{tpu_custom_call.1} parent=1 // loop_body
      %s28 = ssub.s32 %s23, 1
      %s29 = ssub.s32 %s23, 2
      %s30 = sadd.s32 %s23, 1
      %s31 = ssub.s32 %s23, %s30
      %p32 = scmp.eq.s32.totalorder %s31, 0
      %s34 = sadd.s32 %s33, 1
      %s35 = scalar_select %p32, %s33, %s34
      %p38 = pneg %p32
      %p39 = scmp.eq.s32.totalorder %s23, 1
      %p40 = por %p38, %p39
      %p41 = scmp.ne.s32.totalorder %s33, %s36
      %p42 = scmp.eq.s32.totalorder %s23, 0
      %p43 = por %p41, %p42
      %p44 = scmp.ne.s32.totalorder %s33, %s36
      %p45 = scmp.eq.s32.totalorder %s28, 1
      %p46 = por %p44, %p45
      %p47 = scmp.ne.s32.totalorder %s36, %s37
      %p48 = scmp.eq.s32.totalorder %s28, 0
      %p49 = por %p47, %p48
      %p50 = scmp.ne.s32.totalorder %s36, %s37
      %p51 = scmp.eq.s32.totalorder %s29, 1
      %p52 = por %p50, %p51
      %p54 = scmp.ne.s32.totalorder %s37, %s53
      %p55 = scmp.eq.s32.totalorder %s29, 0
      %p56 = por %p54, %p55
      %s58 = sadd.s32 %s57, 1
      %p61 = scmp.eq.s32.totalorder %s23, 1
      %p62 = scmp.ne.s32.totalorder %s57, %s59
      %p63 = scmp.eq.s32.totalorder %s23, 0
      %p64 = por %p62, %p63
      %p65 = scmp.ne.s32.totalorder %s57, %s59
      %p66 = scmp.eq.s32.totalorder %s28, 1
      %p67 = por %p65, %p66
      %p68 = scmp.ne.s32.totalorder %s59, %s60
      %p69 = scmp.eq.s32.totalorder %s28, 0
      %p70 = por %p68, %p69
      %p71 = scmp.ne.s32.totalorder %s59, %s60
      %p72 = scmp.eq.s32.totalorder %s29, 1
      %p73 = por %p71, %p72
      %p75 = scmp.ne.s32.totalorder %s60, %s74
      %p76 = scmp.eq.s32.totalorder %s29, 0
      %p77 = por %p75, %p76
      %s79 = sadd.s32 %s78, 1
      %p82 = scmp.eq.s32.totalorder %s23, 1
      %p83 = scmp.ne.s32.totalorder %s78, %s80
      %p84 = scmp.eq.s32.totalorder %s23, 0
      %p85 = por %p83, %p84
      %p86 = scmp.ne.s32.totalorder %s78, %s80
      %p87 = scmp.eq.s32.totalorder %s28, 1
      %p88 = por %p86, %p87
      %p89 = scmp.ne.s32.totalorder %s80, %s81
      %p90 = scmp.eq.s32.totalorder %s28, 0
      %p91 = por %p89, %p90
      %p92 = scmp.ne.s32.totalorder %s80, %s81
      %p93 = scmp.eq.s32.totalorder %s29, 1
      %p94 = por %p92, %p93
      %p96 = scmp.ne.s32.totalorder %s81, %s95
      %p97 = scmp.eq.s32.totalorder %s29, 0
      %p98 = por %p96, %p97
      %s100 = sadd.s32 %s99, 1
      %p103 = scmp.eq.s32.totalorder %s23, 1
      %p104 = scmp.ne.s32.totalorder %s99, %s101
      %p105 = scmp.eq.s32.totalorder %s23, 0
      %p106 = por %p104, %p105
      %p107 = scmp.ne.s32.totalorder %s99, %s101
      %p108 = scmp.eq.s32.totalorder %s28, 1
      %p109 = por %p107, %p108
      %p110 = scmp.ne.s32.totalorder %s101, %s102
      %p111 = scmp.eq.s32.totalorder %s28, 0
      %p112 = por %p110, %p111
      %p113 = scmp.ne.s32.totalorder %s101, %s102
      %p114 = scmp.eq.s32.totalorder %s29, 1
      %p115 = por %p113, %p114
      %p117 = scmp.ne.s32.totalorder %s102, %s116
      %p118 = scmp.eq.s32.totalorder %s29, 0
      %p119 = por %p117, %p118
      %s121 = sadd.s32 %s120, 1
      %p124 = scmp.eq.s32.totalorder %s23, 1
      %p125 = scmp.ne.s32.totalorder %s120, %s122
      %p126 = scmp.eq.s32.totalorder %s23, 0
      %p127 = por %p125, %p126
      %p128 = scmp.ne.s32.totalorder %s120, %s122
      %p129 = scmp.eq.s32.totalorder %s28, 1
      %p130 = por %p128, %p129
      %p131 = scmp.ne.s32.totalorder %s122, %s123
      %p132 = scmp.eq.s32.totalorder %s28, 0
      %p133 = por %p131, %p132
      %p134 = scmp.ne.s32.totalorder %s122, %s123
      %p135 = scmp.eq.s32.totalorder %s29, 1
      %p136 = por %p134, %p135
      %p138 = scmp.ne.s32.totalorder %s123, %s137
      %p139 = scmp.eq.s32.totalorder %s29, 0
      %p140 = por %p138, %p139
      %s141 = ssub.s32 %s23, %s30
      %p142 = scmp.eq.s32.totalorder %s141, 0
      %s144 = sadd.s32 %s143, 1
      %s145 = scalar_select %p142, %s143, %s144
      %p148 = pneg %p142
      %p149 = scmp.eq.s32.totalorder %s23, 1
      %p150 = por %p148, %p149
      %p151 = scmp.ne.s32.totalorder %s143, %s146
      %p152 = scmp.eq.s32.totalorder %s23, 0
      %p153 = por %p151, %p152
      %p154 = scmp.ne.s32.totalorder %s143, %s146
      %p155 = scmp.eq.s32.totalorder %s28, 1
      %p156 = por %p154, %p155
      %p157 = scmp.ne.s32.totalorder %s146, %s147
      %p158 = scmp.eq.s32.totalorder %s28, 0
      %p159 = por %p157, %p158
      %p160 = scmp.ne.s32.totalorder %s146, %s147
      %p161 = scmp.eq.s32.totalorder %s29, 1
      %p162 = por %p160, %p161
      %p164 = scmp.ne.s32.totalorder %s147, %s163
      %p165 = scmp.eq.s32.totalorder %s29, 0
      %p166 = por %p164, %p165
      %s167 = ssub.s32 %s23, %s30
      %p168 = scmp.eq.s32.totalorder %s167, 0
      %s170 = sadd.s32 %s169, 1
      %s171 = scalar_select %p168, %s169, %s170
      %p174 = pneg %p168
      %p175 = scmp.eq.s32.totalorder %s23, 1
      %p176 = por %p174, %p175
      %p177 = scmp.ne.s32.totalorder %s169, %s172
      %p178 = scmp.eq.s32.totalorder %s23, 0
      %p179 = por %p177, %p178
      %p180 = scmp.ne.s32.totalorder %s169, %s172
      %p181 = scmp.eq.s32.totalorder %s28, 1
      %p182 = por %p180, %p181
      %p183 = scmp.ne.s32.totalorder %s172, %s173
      %p184 = scmp.eq.s32.totalorder %s28, 0
      %p185 = por %p183, %p184
      %p186 = scmp.ne.s32.totalorder %s172, %s173
      %p187 = scmp.eq.s32.totalorder %s29, 1
      %p188 = por %p186, %p187
      %p190 = scmp.ne.s32.totalorder %s173, %s189
      %p191 = scmp.eq.s32.totalorder %s29, 0
      %p192 = por %p190, %p191
      %p193 = scmp.le.s32.totalorder 1, %s23
      %p194 = scmp.lt.s32.totalorder %s23, 3
      %p195 = pnand %p193, %p194
      %p196 = pneg %p195
      // Predicated region
      $region9: #{tpu_custom_call.1} parent=5 // pred_check
        _
      $region10: #{tpu_custom_call.1} parent=5 // pred_check_branch
        %198 = sbr.rel (%p195) target = $region12
      $region11: #{tpu_custom_call.1} parent=5 // pred_region
        %s199 = ssub.s32 %s23, 1
        // Predicated region
        $region13: #{tpu_custom_call.1} parent=11 // pred_check
          %p200 = pneg %p70
        $region14: #{tpu_custom_call.1} parent=11 // pred_check_branch
          %202 = sbr.rel (%p200) target = $region16
        $region15: #{tpu_custom_call.1} parent=11 // pred_region
          %204 = vsyncadd [#allocation6], 0
          %s206 = sshll.u32 %s1, 4
          %s207 = int_to_ptr.hbm [resolvable:$true] %s206
          %s208 = sshll.u32 [#allocation5], 4
          %s209 = int_to_ptr.vmem [resolvable:$true] %s208
          %211 = dma.hbm_to_vmem [thread:$0]  %s207, 16, %s209, [#allocation6]
        $region16: #{tpu_custom_call.1} parent=11 // pred_fallthru
          _
        // Predicated region
        $region17: #{tpu_custom_call.1} parent=11 // pred_check
          %p212 = pneg %p91
        $region18: #{tpu_custom_call.1} parent=11 // pred_check_branch
          %214 = sbr.rel (%p212) target = $region20
        $region19: #{tpu_custom_call.1} parent=11 // pred_region
          _
        $region20: #{tpu_custom_call.1} parent=11 // pred_fallthru
          _
        // Predicated region
        $region21: #{tpu_custom_call.1} parent=11 // pred_check
          %p215 = pneg %p112
        $region22: #{tpu_custom_call.1} parent=11 // pred_check_branch
          %217 = sbr.rel (%p215) target = $region24
        $region23: #{tpu_custom_call.1} parent=11 // pred_region
          %219 = vsyncadd [#allocation6], 0
          %s220 = sshll.u32 %s3, 4
          %s221 = int_to_ptr.hbm [resolvable:$true] %s220
          %s222 = sshll.u32 [#allocation7], 4
          %s223 = int_to_ptr.vmem [resolvable:$true] %s222
          %228 = dma.hbm_to_vmem [thread:$0]  %s221, 6144, %s223, [#allocation6], 128, 128, 8
        $region24: #{tpu_custom_call.1} parent=11 // pred_fallthru
          _
        // Predicated region
        $region25: #{tpu_custom_call.1} parent=11 // pred_check
          %p229 = pneg %p133
        $region26: #{tpu_custom_call.1} parent=11 // pred_check_branch
          %231 = sbr.rel (%p229) target = $region28
        $region27: #{tpu_custom_call.1} parent=11 // pred_region
          _
        $region28: #{tpu_custom_call.1} parent=11 // pred_fallthru
          _
      $region12: #{tpu_custom_call.1} parent=5 // pred_fallthru
        _
      %p232 = scmp.lt.s32.totalorder %s23, 2
      // Predicated region
      $region29: #{tpu_custom_call.1} parent=5 // pred_check
        %p233 = pneg %p232
      $region30: #{tpu_custom_call.1} parent=5 // pred_check_branch
        %235 = sbr.rel (%p233) target = $region32
      $region31: #{tpu_custom_call.1} parent=5 // pred_region
        // Predicated region
        $region33: #{tpu_custom_call.1} parent=31 // pred_check
          %p236 = pneg %p43
        $region34: #{tpu_custom_call.1} parent=31 // pred_check_branch
          %238 = sbr.rel (%p236) target = $region36
        $region35: #{tpu_custom_call.1} parent=31 // pred_region
          %s239 = sand.u32 %s33, 1
          %s240 = scalar_lea.sflag [#allocation3], %s239
          %s241 = sand.u32 %s33, 1
          %s242 = smul.addr %s241, 8
          %s243 = scalar_lea.vmem [#allocation2], %s242
          %245 = vsyncadd %s240, 0
          %s246 = smul.addr %s23, 8
          %s247 = scalar_lea.hbm %s0, %s246
          %s249 = sshll.u32 %s247, 4
          %s250 = int_to_ptr.hbm [resolvable:$true] %s249
          %s251 = sshll.u32 %s243, 4
          %s252 = int_to_ptr.vmem [resolvable:$true] %s251
          %254 = dma.hbm_to_vmem [thread:$0]  %s250, 128, %s252, %s240
        $region36: #{tpu_custom_call.1} parent=31 // pred_fallthru
          _
      $region32: #{tpu_custom_call.1} parent=5 // pred_fallthru
        _
      %p255 = scmp.le.s32.totalorder 1, %s23
      %p256 = scmp.lt.s32.totalorder %s23, 3
      %p257 = pnand %p255, %p256
      %p258 = pneg %p257
      // Predicated region
      $region37: #{tpu_custom_call.1} parent=5 // pred_check
        _
      $region38: #{tpu_custom_call.1} parent=5 // pred_check_branch
        %260 = sbr.rel (%p257) target = $region40
      $region39: #{tpu_custom_call.1} parent=5 // pred_region
        %s261 = ssub.s32 %s23, 1
        %s262 = sand.u32 %s36, 1
        %s263 = scalar_lea.sflag [#allocation3], %s262
        %s264 = sand.u32 %s36, 1
        %s265 = smul.addr %s264, 8
        %s266 = scalar_lea.vmem [#allocation2], %s265
        // Predicated region
        $region41: #{tpu_custom_call.1} parent=39 // pred_check
          %p267 = pneg %p49
        $region42: #{tpu_custom_call.1} parent=39 // pred_check_branch
          %269 = sbr.rel (%p267) target = $region44
        $region43: #{tpu_custom_call.1} parent=39 // pred_region
          %271 = dma.done %s263, 128
        $region44: #{tpu_custom_call.1} parent=39 // pred_fallthru
          _
        // Predicated region
        $region45: #{tpu_custom_call.1} parent=39 // pred_check
          %p272 = pneg %p70
        $region46: #{tpu_custom_call.1} parent=39 // pred_check_branch
          %274 = sbr.rel (%p272) target = $region48
        $region47: #{tpu_custom_call.1} parent=39 // pred_region
          %276 = dma.done [#allocation6], 16
        $region48: #{tpu_custom_call.1} parent=39 // pred_fallthru
          _
        // Predicated region
        $region49: #{tpu_custom_call.1} parent=39 // pred_check
          %p277 = pneg %p112
        $region50: #{tpu_custom_call.1} parent=39 // pred_check_branch
          %279 = sbr.rel (%p277) target = $region52
        $region51: #{tpu_custom_call.1} parent=39 // pred_region
          %281 = dma.done [#allocation6], 6144
        $region52: #{tpu_custom_call.1} parent=39 // pred_fallthru
          _
        %s282 = sand.u32 %s36, 1
        %s283 = scalar_lea.sflag [#allocation3], %s282
        %s284 = sand.u32 %s36, 1
        %s285 = smul.addr %s284, 8
        %s286 = scalar_lea.vmem [#allocation2], %s285
        %p287 = pneg %p49
        %p288 = pneg %p46
        %p289 = pneg %p70
        %p290 = pneg %p67
        %p291 = pneg %p91
        %p292 = pneg %p88
        %p293 = pneg %p112
        %p294 = pneg %p109
        %p295 = pneg %p133
        %p296 = pneg %p130
        %p297 = pneg %p159
        %p298 = pneg %p156
        %s299 = sand.u32 %s146, 1
        %s300 = scalar_lea.sflag [#allocation4], %s299
        %s301 = sand.u32 %s146, 1
        %s302 = smul.addr %s301, 8
        %s303 = scalar_lea.vmem [#allocation8], %s302
        %p304 = pneg %p185
        %p305 = pneg %p182
        %s306 = sand.u32 %s172, 1
        %s307 = scalar_lea.sflag [#allocation10], %s306
        %s308 = sand.u32 %s172, 1
        %s309 = scalar_lea.vmem [#allocation9], %s308
        %v310 = vld [vmem:[%s266] sm:$0xff]
        %v311 = vlaneseq
        %v312 = vand.u32 %v311, 127
        %vm313 = vcmp.lt.s32.totalorder %v312, 32
        %314 = vadd.xlane.f32.xlu0 %v310
        %v315 = vpop.xlane.xlu0 %314
        %v316 = vmul.f32 %v315, 0.03125
        %v317 = vsub.f32 %v310, %v316
        %v318 = vsel %vm313, 1, 0
        %vm319 = vcmp.eq.s32.totalorder %v318, 1
        %v320 = vsel %vm319, %v317, 0.0
        %v321 = vmul.f32 %v320, %v320
        %322 = vadd.xlane.f32.xlu0 %v321
        %v323 = vpop.xlane.xlu0 %322
        %v324 = vmul.f32 %v323, 0.03125
        %v325 = vadd.f32 %v324, 1e-05
        %v326 = vrsqrt.pop %v325
        %v327 = vmul.f32 %v326, %v325
        %v328 = vmul.f32 %v327, %v326
        %v329 = vmul.f32 0.5, %v328
        %v330 = vsub.f32 1.5, %v329
        %v331 = vmul.f32 %v326, %v330
        %vm332 = vweird.f32 %v325
        %vm333 = vweird.f32 %v326
        %vm334 = vmor %vm332, %vm333
        %v335 = vsel %vm334, %v326, %v331
        %v336 = vmul.f32 %v320, %v335
        %v337 = vld [vmem:[#allocation5] sm:$0x1]
        %v339 = vperm.slane %v337, 0
        %v341 = vmul.f32 %v336, %v339
        %v342 = vld [vmem:[%s2] sm:$0x1]
        %v344 = vperm.slane %v342, 0
        %v346 = vadd.f32 %v341, %v344
        %v347 = vlaneseq
        %v348 = vshrl.u32 %v347, 7
        %v349 = vrot.slane %v346, 7
        %v350 = vadd.s32 %v348, 4294967295
        %vm351 = vcmp.ge.s32.totalorder %v350, 0
        %vm352 = vcmp.lt.s32.totalorder %v350, 8
        %vm353 = vmand %vm351, %vm352
        %v354 = vsel %vm353, 1, 0
        %vm355 = vcmp.eq.s32.totalorder %v354, 1
        %v356 = vsel %vm355, %v349, 0.0
        %v357 = vrot.slane %v346, 1
        %v358 = vadd.s32 %v348, 1
        %vm359 = vcmp.ge.s32.totalorder %v358, 0
        %vm360 = vcmp.lt.s32.totalorder %v358, 8
        %vm361 = vmand %vm359, %vm360
        %v362 = vsel %vm361, 1, 0
        %vm363 = vcmp.eq.s32.totalorder %v362, 1
        %v364 = vsel %vm363, %v357, 0.0
        %v365 = vld [vmem:[#allocation7] sm:$0xff]
        %v366 = vld [vmem:[#allocation7 + $0x8] sm:$0xff]
        %v367 = vld [vmem:[#allocation7 + $0x10] sm:$0xff]
        %v368 = vld [vmem:[#allocation7 + $0x18] sm:$0xff]
        %v369 = vld [vmem:[#allocation7 + $0x20] sm:$0xff]
        %v370 = vld [vmem:[#allocation7 + $0x28] sm:$0xff]
        %v371 = vld [vmem:[#allocation7 + $0x30] sm:$0xff]
        %v372 = vld [vmem:[#allocation7 + $0x38] sm:$0xff]
        %v373 = vld [vmem:[#allocation7 + $0x40] sm:$0xff]
        %v374 = vld [vmem:[#allocation7 + $0x48] sm:$0xff]
        %v375 = vld [vmem:[#allocation7 + $0x50] sm:$0xff]
        %v376 = vld [vmem:[#allocation7 + $0x58] sm:$0xff]
        %v377 = vld [vmem:[#allocation7 + $0x60] sm:$0xff]
        %v378 = vld [vmem:[#allocation7 + $0x68] sm:$0xff]
        %v379 = vld [vmem:[#allocation7 + $0x70] sm:$0xff]
        %v380 = vld [vmem:[#allocation7 + $0x78] sm:$0xff]
        %v381 = vld [vmem:[#allocation7 + $0x80] sm:$0xff]
        %v382 = vld [vmem:[#allocation7 + $0x88] sm:$0xff]
        %v383 = vld [vmem:[#allocation7 + $0x90] sm:$0xff]
        %v384 = vld [vmem:[#allocation7 + $0x98] sm:$0xff]
        %v385 = vld [vmem:[#allocation7 + $0xa0] sm:$0xff]
        %v386 = vld [vmem:[#allocation7 + $0xa8] sm:$0xff]
        %v387 = vld [vmem:[#allocation7 + $0xb0] sm:$0xff]
        %v388 = vld [vmem:[#allocation7 + $0xb8] sm:$0xff]
        %v389 = vld [vmem:[#allocation7 + $0xc0] sm:$0xff]
        %v390 = vld [vmem:[#allocation7 + $0xc8] sm:$0xff]
        %v391 = vld [vmem:[#allocation7 + $0xd0] sm:$0xff]
        %v392 = vld [vmem:[#allocation7 + $0xd8] sm:$0xff]
        %v393 = vld [vmem:[#allocation7 + $0xe0] sm:$0xff]
        %v394 = vld [vmem:[#allocation7 + $0xe8] sm:$0xff]
        %v395 = vld [vmem:[#allocation7 + $0xf0] sm:$0xff]
        %v396 = vld [vmem:[#allocation7 + $0xf8] sm:$0xff]
        %v397 = vld [vmem:[#allocation7 + $0x100] sm:$0xff]
        %v398 = vld [vmem:[#allocation7 + $0x108] sm:$0xff]
        %v399 = vld [vmem:[#allocation7 + $0x110] sm:$0xff]
        %v400 = vld [vmem:[#allocation7 + $0x118] sm:$0xff]
        %v401 = vld [vmem:[#allocation7 + $0x120] sm:$0xff]
        %v402 = vld [vmem:[#allocation7 + $0x128] sm:$0xff]
        %v403 = vld [vmem:[#allocation7 + $0x130] sm:$0xff]
        %v404 = vld [vmem:[#allocation7 + $0x138] sm:$0xff]
        %v405 = vld [vmem:[#allocation7 + $0x140] sm:$0xff]
        %v406 = vld [vmem:[#allocation7 + $0x148] sm:$0xff]
        %v407 = vld [vmem:[#allocation7 + $0x150] sm:$0xff]
        %v408 = vld [vmem:[#allocation7 + $0x158] sm:$0xff]
        %v409 = vld [vmem:[#allocation7 + $0x160] sm:$0xff]
        %v410 = vld [vmem:[#allocation7 + $0x168] sm:$0xff]
        %v411 = vld [vmem:[#allocation7 + $0x170] sm:$0xff]
        %v412 = vld [vmem:[#allocation7 + $0x178] sm:$0xff]
        %v413 = vld [vmem:[%s4] sm:$0x1]
        %v415 = vperm.slane %v413, 0
        %417 = vmatpush.msra.mxu0 %v380
        %418 = vmatpush.msra.mxu0 %v379
        %419 = vmatpush.msra.mxu0 %v378
        %420 = vmatpush.msra.mxu0 %v377
        %421 = vmatpush.msra.mxu0 %v376
        %422 = vmatpush.msra.mxu0 %v375
        %423 = vmatpush.msra.mxu0 %v374
        %424 = vmatpush.msra.mxu0 %v373
        %425 = vmatpush.msra.mxu0 %v372
        %426 = vmatpush.msra.mxu0 %v371
        %427 = vmatpush.msra.mxu0 %v370
        %428 = vmatpush.msra.mxu0 %v369
        %429 = vmatpush.msra.mxu0 %v368
        %430 = vmatpush.msra.mxu0 %v367
        %431 = vmatpush.msra.mxu0 %v366
        %432 = vmatpush.msra.mxu0 %v365
        %433 = vmatmul.f32.gmra.mxu0 %v356
        %v434 = vpop.f32.mrf.mxu0
        %v435 = vadd.f32 %v415, %v434
        %436 = vdwg.mxu0
        %437 = vmatpush.msra.mxu0 %v396
        %438 = vmatpush.msra.mxu0 %v395
        %439 = vmatpush.msra.mxu0 %v394
        %440 = vmatpush.msra.mxu0 %v393
        %441 = vmatpush.msra.mxu0 %v392
        %442 = vmatpush.msra.mxu0 %v391
        %443 = vmatpush.msra.mxu0 %v390
        %444 = vmatpush.msra.mxu0 %v389
        %445 = vmatpush.msra.mxu0 %v388
        %446 = vmatpush.msra.mxu0 %v387
        %447 = vmatpush.msra.mxu0 %v386
        %448 = vmatpush.msra.mxu0 %v385
        %449 = vmatpush.msra.mxu0 %v384
        %450 = vmatpush.msra.mxu0 %v383
        %451 = vmatpush.msra.mxu0 %v382
        %452 = vmatpush.msra.mxu0 %v381
        %453 = vmatmul.f32.gmra.mxu0 %v346
        %v454 = vpop.f32.mrf.mxu0
        %v455 = vadd.f32 %v435, %v454
        %456 = vdwg.mxu0
        %457 = vmatpush.msra.mxu0 %v412
        %458 = vmatpush.msra.mxu0 %v411
        %459 = vmatpush.msra.mxu0 %v410
        %460 = vmatpush.msra.mxu0 %v409
        %461 = vmatpush.msra.mxu0 %v408
        %462 = vmatpush.msra.mxu0 %v407
        %463 = vmatpush.msra.mxu0 %v406
        %464 = vmatpush.msra.mxu0 %v405
        %465 = vmatpush.msra.mxu0 %v404
        %466 = vmatpush.msra.mxu0 %v403
        %467 = vmatpush.msra.mxu0 %v402
        %468 = vmatpush.msra.mxu0 %v401
        %469 = vmatpush.msra.mxu0 %v400
        %470 = vmatpush.msra.mxu0 %v399
        %471 = vmatpush.msra.mxu0 %v398
        %472 = vmatpush.msra.mxu0 %v397
        %473 = vmatmul.f32.gmra.mxu0 %v364
        %v474 = vpop.f32.mrf.mxu0
        %v475 = vadd.f32 %v455, %v474
        %476 = vdwg.mxu0
        %v477 = vmax.f32 %v475, 0.0
        %v478 = vadd.f32 %v477, %v310
        %479 = vst [vmem:[%s303] sm:$0xff] %v478
        %v480 = vrot.slane %v477, 4
        %v481 = vmax.f32 %v477, %v480
        %v482 = vrot.slane %v481, 2
        %v483 = vmax.f32 %v481, %v482
        %v484 = vrot.slane %v483, 1
        %v485 = vmax.f32 %v483, %v484
        %486 = vst [vmem:[%s309] sm:$0x1] %v485
        %s487 = sand.u32 %s146, 1
        %s488 = scalar_lea.sflag [#allocation4], %s487
        %s489 = sand.u32 %s146, 1
        %s490 = smul.addr %s489, 8
        %s491 = scalar_lea.vmem [#allocation8], %s490
        %s492 = sand.u32 %s172, 1
        %s493 = scalar_lea.sflag [#allocation10], %s492
        %s494 = sand.u32 %s172, 1
        %s495 = scalar_lea.vmem [#allocation9], %s494
        // Predicated region
        $region53: #{tpu_custom_call.1} parent=39 // pred_check
          %p496 = pneg %p156
        $region54: #{tpu_custom_call.1} parent=39 // pred_check_branch
          %498 = sbr.rel (%p496) target = $region56
        $region55: #{tpu_custom_call.1} parent=39 // pred_region
          %500 = vsyncadd %s488, 0
          %s501 = smul.addr %s28, 8
          %s502 = scalar_lea.hbm %s5, %s501
          %s504 = sshll.u32 %s491, 4
          %s505 = int_to_ptr.vmem [resolvable:$true] %s504
          %s506 = sshll.u32 %s502, 4
          %s507 = int_to_ptr.hbm [resolvable:$true] %s506
          %509 = dma.vmem_to_hbm [thread:$0]  %s505, 128, %s507, %s488
        $region56: #{tpu_custom_call.1} parent=39 // pred_fallthru
          _
        // Predicated region
        $region57: #{tpu_custom_call.1} parent=39 // pred_check
          %p510 = pneg %p182
        $region58: #{tpu_custom_call.1} parent=39 // pred_check_branch
          %512 = sbr.rel (%p510) target = $region60
        $region59: #{tpu_custom_call.1} parent=39 // pred_region
          %514 = vsyncadd %s493, 0
          %s515 = scalar_lea.hbm %s6, %s28
          %s517 = sshll.u32 %s495, 4
          %s518 = int_to_ptr.vmem [resolvable:$true] %s517
          %s519 = sshll.u32 %s515, 4
          %s520 = int_to_ptr.hbm [resolvable:$true] %s519
          %522 = dma.vmem_to_hbm [thread:$0]  %s518, 16, %s520, %s493
        $region60: #{tpu_custom_call.1} parent=39 // pred_fallthru
          _
      $region40: #{tpu_custom_call.1} parent=5 // pred_fallthru
        _
      %p523 = scmp.le.s32.totalorder 2, %s23
      // Predicated region
      $region61: #{tpu_custom_call.1} parent=5 // pred_check
        %p524 = pneg %p523
      $region62: #{tpu_custom_call.1} parent=5 // pred_check_branch
        %526 = sbr.rel (%p524) target = $region64
      $region63: #{tpu_custom_call.1} parent=5 // pred_region
        %s527 = ssub.s32 %s23, 2
        // Predicated region
        $region65: #{tpu_custom_call.1} parent=63 // pred_check
          %p528 = pneg %p162
        $region66: #{tpu_custom_call.1} parent=63 // pred_check_branch
          %530 = sbr.rel (%p528) target = $region68
        $region67: #{tpu_custom_call.1} parent=63 // pred_region
          %s531 = sand.u32 %s147, 1
          %s532 = scalar_lea.sflag [#allocation4], %s531
          %s533 = sand.u32 %s147, 1
          %s534 = smul.addr %s533, 8
          %s535 = scalar_lea.vmem [#allocation8], %s534
          %537 = dma.done %s532, 128
        $region68: #{tpu_custom_call.1} parent=63 // pred_fallthru
          _
        // Predicated region
        $region69: #{tpu_custom_call.1} parent=63 // pred_check
          %p538 = pneg %p188
        $region70: #{tpu_custom_call.1} parent=63 // pred_check_branch
          %540 = sbr.rel (%p538) target = $region72
        $region71: #{tpu_custom_call.1} parent=63 // pred_region
          %s541 = sand.u32 %s173, 1
          %s542 = scalar_lea.sflag [#allocation10], %s541
          %s543 = sand.u32 %s173, 1
          %s544 = scalar_lea.vmem [#allocation9], %s543
          %546 = dma.done %s542, 16
        $region72: #{tpu_custom_call.1} parent=63 // pred_fallthru
          _
      $region64: #{tpu_custom_call.1} parent=5 // pred_fallthru
        _
    $region6: #{tpu_custom_call.1} parent=1 // loop_footer
      %s27 = sadd.s32 1, %s23
    $region7: #{tpu_custom_call.1} parent=1 // loop_footer_branch
      %22 = sbr.rel target = $region3
    $region8: #{tpu_custom_call.1} parent=1 // loop_exit
      _
    %547 = vsyncpa [#allocation3], 1
    %s548 = scalar_lea.sflag [#allocation3], 1
    %549 = vsyncpa %s548, 1
    %550 = vsyncpa [#allocation6], 1
    %551 = vsyncpa [#allocation4], 1
    %s552 = scalar_lea.sflag [#allocation4], 1
    %553 = vsyncpa %s552, 1
    %554 = vsyncpa [#allocation10], 1
    %s555 = scalar_lea.sflag [#allocation10], 1
    %556 = vsyncpa %s555, 1

// kernel: tpu_custom_call.1
$region0: #{tpu_custom_call.1}
  #allocation0 [shape = 'u32[]', space=smem, size = 0x4, offset = 0x4, fixed_abs, tag = 'smem constant byte address 0x4 - core index']
  #allocation1 [shape = 'u32[72,128]{1,0:T(1,128)}', space=vmem, size = 0x9000, scoped, tag = 'internal scratch']
  %s0 = inlined_call_operand.hbm [shape: f32[2,8,128], index: 0, kind: input, shape index: {}]
  %s1 = inlined_call_operand.hbm [shape: f32[1,128], index: 1, kind: input, shape index: {}]
  %s2 = inlined_call_operand.vmem [shape: f32[1,128], index: 2, kind: input, shape index: {}]
  %s3 = inlined_call_operand.hbm [shape: f32[384,128], index: 3, kind: input, shape index: {}]
  %s4 = inlined_call_operand.vmem [shape: f32[1,128], index: 4, kind: input, shape index: {}]
  %s5 = inlined_call_operand.hbm [shape: f32[2,8,128], index: 5, kind: output, shape index: {0}]
  %s6 = inlined_call_operand.hbm [shape: f32[2,1,128], index: 6, kind: output, shape index: {1}]
  %7 = xla_tuple %s5, %s6
  %s8 = sld [smem:[#allocation0]]
  $region73: #{tpu_custom_call.1} parent=0
    _
  %s10 = ssub.s32 1, %s8
  %s11 = scalar_select 0, %s10, %s8
  $region1: #{tpu_custom_call.1} parent=0
    #allocation2 [shape = 'u8[8192]{0}', space=vmem, size = 0x2000, scoped, tag = 'input window, operand 0']
    #allocation3 [shape = 's32[2]{0}', space=sflag, size = 0x8, scoped, tag = 'scoped memory for tpu_custom_call.1']
    #allocation4 [shape = 's32[2]{0}', space=sflag, size = 0x8, scoped, tag = 'scoped memory for tpu_custom_call.1']
    #allocation5 [shape = 'u8[512]{0}', space=vmem, size = 0x400, scoped, tag = 'input window, operand 1, single buffered']
    #allocation6 [shape = 's32[1]{0}', space=sflag, size = 0x4, scoped, tag = 'scoped memory for tpu_custom_call.1']
    #allocation7 [shape = 'u8[196608]{0}', space=vmem, size = 0x30000, scoped, tag = 'input window, operand 3, single buffered']
    #allocation8 [shape = 'u8[8192]{0}', space=vmem, size = 0x2000, scoped, tag = 'output window, operand 0']
    #allocation9 [shape = 'u8[1024]{0}', space=vmem, size = 0x400, scoped, tag = 'output window, operand 1']
    #allocation10 [shape = 's32[2]{0}', space=sflag, size = 0x8, scoped, tag = 'scoped memory for tpu_custom_call.1']
    %12 = vsyncpa [#allocation3], 0
    %s13 = scalar_lea.sflag [#allocation3], 1
    %14 = vsyncpa %s13, 0
    %15 = vsyncpa [#allocation6], 0
    %16 = vsyncpa [#allocation4], 0
    %s17 = scalar_lea.sflag [#allocation4], 1
    %18 = vsyncpa %s17, 0
    %19 = vsyncpa [#allocation10], 0
    %s20 = scalar_lea.sflag [#allocation10], 1
    %21 = vsyncpa %s20, 0
    loop: start=0, step=1, limit=4
    $region2: #{tpu_custom_call.1} parent=1 // loop_pre_header
      _
    $region3: #{tpu_custom_call.1} parent=1 // loop_header
      %s23 = sphi 0, %s27
      %p24 = scmp.ge.s32.totalorder %s23, 4
      %s33 = sphi 0, %s35
      %s36 = sphi 0, %s33
      %s37 = sphi 0, %s36
      %s53 = sphi 0, %s37
      %s57 = sphi 0, %s57
      %s59 = sphi 0, %s57
      %s60 = sphi 0, %s59
      %s74 = sphi 0, %s60
      %s78 = sphi 0, %s78
      %s80 = sphi 0, %s78
      %s81 = sphi 0, %s80
      %s95 = sphi 0, %s81
      %s99 = sphi 0, %s99
      %s101 = sphi 0, %s99
      %s102 = sphi 0, %s101
      %s116 = sphi 0, %s102
      %s120 = sphi 0, %s120
      %s122 = sphi 0, %s120
      %s123 = sphi 0, %s122
      %s137 = sphi 0, %s123
      %s143 = sphi 0, %s145
      %s146 = sphi 0, %s143
      %s147 = sphi 0, %s146
      %s163 = sphi 0, %s147
      %s169 = sphi 0, %s171
      %s172 = sphi 0, %s169
      %s173 = sphi 0, %s172
      %s189 = sphi 0, %s173
    $region4: #{tpu_custom_call.1} parent=1 // loop_header_branch
      %26 = sbr.rel (%p24) target = $region8
    $region5: #{tpu_custom_call.1} parent=1 // loop_body
      %s28 = ssub.s32 %s23, 1
      %s29 = ssub.s32 %s23, 2
      %s30 = sadd.s32 %s23, 1
      %s31 = ssub.s32 %s23, %s30
      %p32 = scmp.eq.s32.totalorder %s31, 0
      %s34 = sadd.s32 %s33, 1
      %s35 = scalar_select %p32, %s33, %s34
      %p38 = pneg %p32
      %p39 = scmp.eq.s32.totalorder %s23, 1
      %p40 = por %p38, %p39
      %p41 = scmp.ne.s32.totalorder %s33, %s36
      %p42 = scmp.eq.s32.totalorder %s23, 0
      %p43 = por %p41, %p42
      %p44 = scmp.ne.s32.totalorder %s33, %s36
      %p45 = scmp.eq.s32.totalorder %s28, 1
      %p46 = por %p44, %p45
      %p47 = scmp.ne.s32.totalorder %s36, %s37
      %p48 = scmp.eq.s32.totalorder %s28, 0
      %p49 = por %p47, %p48
      %p50 = scmp.ne.s32.totalorder %s36, %s37
      %p51 = scmp.eq.s32.totalorder %s29, 1
      %p52 = por %p50, %p51
      %p54 = scmp.ne.s32.totalorder %s37, %s53
      %p55 = scmp.eq.s32.totalorder %s29, 0
      %p56 = por %p54, %p55
      %s58 = sadd.s32 %s57, 1
      %p61 = scmp.eq.s32.totalorder %s23, 1
      %p62 = scmp.ne.s32.totalorder %s57, %s59
      %p63 = scmp.eq.s32.totalorder %s23, 0
      %p64 = por %p62, %p63
      %p65 = scmp.ne.s32.totalorder %s57, %s59
      %p66 = scmp.eq.s32.totalorder %s28, 1
      %p67 = por %p65, %p66
      %p68 = scmp.ne.s32.totalorder %s59, %s60
      %p69 = scmp.eq.s32.totalorder %s28, 0
      %p70 = por %p68, %p69
      %p71 = scmp.ne.s32.totalorder %s59, %s60
      %p72 = scmp.eq.s32.totalorder %s29, 1
      %p73 = por %p71, %p72
      %p75 = scmp.ne.s32.totalorder %s60, %s74
      %p76 = scmp.eq.s32.totalorder %s29, 0
      %p77 = por %p75, %p76
      %s79 = sadd.s32 %s78, 1
      %p82 = scmp.eq.s32.totalorder %s23, 1
      %p83 = scmp.ne.s32.totalorder %s78, %s80
      %p84 = scmp.eq.s32.totalorder %s23, 0
      %p85 = por %p83, %p84
      %p86 = scmp.ne.s32.totalorder %s78, %s80
      %p87 = scmp.eq.s32.totalorder %s28, 1
      %p88 = por %p86, %p87
      %p89 = scmp.ne.s32.totalorder %s80, %s81
      %p90 = scmp.eq.s32.totalorder %s28, 0
      %p91 = por %p89, %p90
      %p92 = scmp.ne.s32.totalorder %s80, %s81
      %p93 = scmp.eq.s32.totalorder %s29, 1
      %p94 = por %p92, %p93
      %p96 = scmp.ne.s32.totalorder %s81, %s95
      %p97 = scmp.eq.s32.totalorder %s29, 0
      %p98 = por %p96, %p97
      %s100 = sadd.s32 %s99, 1
      %p103 = scmp.eq.s32.totalorder %s23, 1
      %p104 = scmp.ne.s32.totalorder %s99, %s101
      %p105 = scmp.eq.s32.totalorder %s23, 0
      %p106 = por %p104, %p105
      %p107 = scmp.ne.s32.totalorder %s99, %s101
      %p108 = scmp.eq.s32.totalorder %s28, 1
      %p109 = por %p107, %p108
      %p110 = scmp.ne.s32.totalorder %s101, %s102
      %p111 = scmp.eq.s32.totalorder %s28, 0
      %p112 = por %p110, %p111
      %p113 = scmp.ne.s32.totalorder %s101, %s102
      %p114 = scmp.eq.s32.totalorder %s29, 1
      %p115 = por %p113, %p114
      %p117 = scmp.ne.s32.totalorder %s102, %s116
      %p118 = scmp.eq.s32.totalorder %s29, 0
      %p119 = por %p117, %p118
      %s121 = sadd.s32 %s120, 1
      %p124 = scmp.eq.s32.totalorder %s23, 1
      %p125 = scmp.ne.s32.totalorder %s120, %s122
      %p126 = scmp.eq.s32.totalorder %s23, 0
      %p127 = por %p125, %p126
      %p128 = scmp.ne.s32.totalorder %s120, %s122
      %p129 = scmp.eq.s32.totalorder %s28, 1
      %p130 = por %p128, %p129
      %p131 = scmp.ne.s32.totalorder %s122, %s123
      %p132 = scmp.eq.s32.totalorder %s28, 0
      %p133 = por %p131, %p132
      %p134 = scmp.ne.s32.totalorder %s122, %s123
      %p135 = scmp.eq.s32.totalorder %s29, 1
      %p136 = por %p134, %p135
      %p138 = scmp.ne.s32.totalorder %s123, %s137
      %p139 = scmp.eq.s32.totalorder %s29, 0
      %p140 = por %p138, %p139
      %s141 = ssub.s32 %s23, %s30
      %p142 = scmp.eq.s32.totalorder %s141, 0
      %s144 = sadd.s32 %s143, 1
      %s145 = scalar_select %p142, %s143, %s144
      %p148 = pneg %p142
      %p149 = scmp.eq.s32.totalorder %s23, 1
      %p150 = por %p148, %p149
      %p151 = scmp.ne.s32.totalorder %s143, %s146
      %p152 = scmp.eq.s32.totalorder %s23, 0
      %p153 = por %p151, %p152
      %p154 = scmp.ne.s32.totalorder %s143, %s146
      %p155 = scmp.eq.s32.totalorder %s28, 1
      %p156 = por %p154, %p155
      %p157 = scmp.ne.s32.totalorder %s146, %s147
      %p158 = scmp.eq.s32.totalorder %s28, 0
      %p159 = por %p157, %p158
      %p160 = scmp.ne.s32.totalorder %s146, %s147
      %p161 = scmp.eq.s32.totalorder %s29, 1
      %p162 = por %p160, %p161
      %p164 = scmp.ne.s32.totalorder %s147, %s163
      %p165 = scmp.eq.s32.totalorder %s29, 0
      %p166 = por %p164, %p165
      %s167 = ssub.s32 %s23, %s30
      %p168 = scmp.eq.s32.totalorder %s167, 0
      %s170 = sadd.s32 %s169, 1
      %s171 = scalar_select %p168, %s169, %s170
      %p174 = pneg %p168
      %p175 = scmp.eq.s32.totalorder %s23, 1
      %p176 = por %p174, %p175
      %p177 = scmp.ne.s32.totalorder %s169, %s172
      %p178 = scmp.eq.s32.totalorder %s23, 0
      %p179 = por %p177, %p178
      %p180 = scmp.ne.s32.totalorder %s169, %s172
      %p181 = scmp.eq.s32.totalorder %s28, 1
      %p182 = por %p180, %p181
      %p183 = scmp.ne.s32.totalorder %s172, %s173
      %p184 = scmp.eq.s32.totalorder %s28, 0
      %p185 = por %p183, %p184
      %p186 = scmp.ne.s32.totalorder %s172, %s173
      %p187 = scmp.eq.s32.totalorder %s29, 1
      %p188 = por %p186, %p187
      %p190 = scmp.ne.s32.totalorder %s173, %s189
      %p191 = scmp.eq.s32.totalorder %s29, 0
      %p192 = por %p190, %p191
      %p193 = scmp.le.s32.totalorder 1, %s23
      %p194 = scmp.lt.s32.totalorder %s23, 3
      %p195 = pnand %p193, %p194
      %p196 = pneg %p195
      // Predicated region
      $region9: #{tpu_custom_call.1} parent=5 // pred_check
        _
      $region10: #{tpu_custom_call.1} parent=5 // pred_check_branch
        %198 = sbr.rel (%p195) target = $region12
      $region11: #{tpu_custom_call.1} parent=5 // pred_region
        %s199 = ssub.s32 %s23, 1
        // Predicated region
        $region13: #{tpu_custom_call.1} parent=11 // pred_check
          %p200 = pneg %p70
        $region14: #{tpu_custom_call.1} parent=11 // pred_check_branch
          %202 = sbr.rel (%p200) target = $region16
        $region15: #{tpu_custom_call.1} parent=11 // pred_region
          %204 = vsyncadd [#allocation6], 0
          %s206 = sshll.u32 %s1, 4
          %s207 = int_to_ptr.hbm [resolvable:$true] %s206
          %s208 = sshll.u32 [#allocation5], 4
          %s209 = int_to_ptr.vmem [resolvable:$true] %s208
          %211 = dma.hbm_to_vmem [thread:$0]  %s207, 16, %s209, [#allocation6]
        $region16: #{tpu_custom_call.1} parent=11 // pred_fallthru
          _
        // Predicated region
        $region17: #{tpu_custom_call.1} parent=11 // pred_check
          %p212 = pneg %p91
        $region18: #{tpu_custom_call.1} parent=11 // pred_check_branch
          %214 = sbr.rel (%p212) target = $region20
        $region19: #{tpu_custom_call.1} parent=11 // pred_region
          _
        $region20: #{tpu_custom_call.1} parent=11 // pred_fallthru
          _
        // Predicated region
        $region21: #{tpu_custom_call.1} parent=11 // pred_check
          %p215 = pneg %p112
        $region22: #{tpu_custom_call.1} parent=11 // pred_check_branch
          %217 = sbr.rel (%p215) target = $region24
        $region23: #{tpu_custom_call.1} parent=11 // pred_region
          %219 = vsyncadd [#allocation6], 0
          %s220 = sshll.u32 %s3, 4
          %s221 = int_to_ptr.hbm [resolvable:$true] %s220
          %s222 = sshll.u32 [#allocation7], 4
          %s223 = int_to_ptr.vmem [resolvable:$true] %s222
          %228 = dma.hbm_to_vmem [thread:$0]  %s221, 6144, %s223, [#allocation6], 128, 128, 8
        $region24: #{tpu_custom_call.1} parent=11 // pred_fallthru
          _
        // Predicated region
        $region25: #{tpu_custom_call.1} parent=11 // pred_check
          %p229 = pneg %p133
        $region26: #{tpu_custom_call.1} parent=11 // pred_check_branch
          %231 = sbr.rel (%p229) target = $region28
        $region27: #{tpu_custom_call.1} parent=11 // pred_region
          _
        $region28: #{tpu_custom_call.1} parent=11 // pred_fallthru
          _
      $region12: #{tpu_custom_call.1} parent=5 // pred_fallthru
        _
      %p232 = scmp.lt.s32.totalorder %s23, 2
      // Predicated region
      $region29: #{tpu_custom_call.1} parent=5 // pred_check
        %p233 = pneg %p232
      $region30: #{tpu_custom_call.1} parent=5 // pred_check_branch
        %235 = sbr.rel (%p233) target = $region32
      $region31: #{tpu_custom_call.1} parent=5 // pred_region
        // Predicated region
        $region33: #{tpu_custom_call.1} parent=31 // pred_check
          %p236 = pneg %p43
        $region34: #{tpu_custom_call.1} parent=31 // pred_check_branch
          %238 = sbr.rel (%p236) target = $region36
        $region35: #{tpu_custom_call.1} parent=31 // pred_region
          %s239 = sand.u32 %s33, 1
          %s240 = scalar_lea.sflag [#allocation3], %s239
          %s241 = sand.u32 %s33, 1
          %s242 = smul.addr %s241, 8
          %s243 = scalar_lea.vmem [#allocation2], %s242
          %245 = vsyncadd %s240, 0
          %s246 = smul.addr %s23, 8
          %s247 = scalar_lea.hbm %s0, %s246
          %s249 = sshll.u32 %s247, 4
          %s250 = int_to_ptr.hbm [resolvable:$true] %s249
          %s251 = sshll.u32 %s243, 4
          %s252 = int_to_ptr.vmem [resolvable:$true] %s251
          %254 = dma.hbm_to_vmem [thread:$0]  %s250, 128, %s252, %s240
        $region36: #{tpu_custom_call.1} parent=31 // pred_fallthru
          _
      $region32: #{tpu_custom_call.1} parent=5 // pred_fallthru
        _
      %p255 = scmp.le.s32.totalorder 1, %s23
      %p256 = scmp.lt.s32.totalorder %s23, 3
      %p257 = pnand %p255, %p256
      %p258 = pneg %p257
      // Predicated region
      $region37: #{tpu_custom_call.1} parent=5 // pred_check
        _
      $region38: #{tpu_custom_call.1} parent=5 // pred_check_branch
        %260 = sbr.rel (%p257) target = $region40
      $region39: #{tpu_custom_call.1} parent=5 // pred_region
        %s261 = ssub.s32 %s23, 1
        %s262 = sand.u32 %s36, 1
        %s263 = scalar_lea.sflag [#allocation3], %s262
        %s264 = sand.u32 %s36, 1
        %s265 = smul.addr %s264, 8
        %s266 = scalar_lea.vmem [#allocation2], %s265
        // Predicated region
        $region41: #{tpu_custom_call.1} parent=39 // pred_check
          %p267 = pneg %p49
        $region42: #{tpu_custom_call.1} parent=39 // pred_check_branch
          %269 = sbr.rel (%p267) target = $region44
        $region43: #{tpu_custom_call.1} parent=39 // pred_region
          %271 = dma.done %s263, 128
        $region44: #{tpu_custom_call.1} parent=39 // pred_fallthru
          _
        // Predicated region
        $region45: #{tpu_custom_call.1} parent=39 // pred_check
          %p272 = pneg %p70
        $region46: #{tpu_custom_call.1} parent=39 // pred_check_branch
          %274 = sbr.rel (%p272) target = $region48
        $region47: #{tpu_custom_call.1} parent=39 // pred_region
          %276 = dma.done [#allocation6], 16
        $region48: #{tpu_custom_call.1} parent=39 // pred_fallthru
          _
        // Predicated region
        $region49: #{tpu_custom_call.1} parent=39 // pred_check
          %p277 = pneg %p112
        $region50: #{tpu_custom_call.1} parent=39 // pred_check_branch
          %279 = sbr.rel (%p277) target = $region52
        $region51: #{tpu_custom_call.1} parent=39 // pred_region
          %281 = dma.done [#allocation6], 6144
        $region52: #{tpu_custom_call.1} parent=39 // pred_fallthru
          _
        %s282 = sand.u32 %s36, 1
        %s283 = scalar_lea.sflag [#allocation3], %s282
        %s284 = sand.u32 %s36, 1
        %s285 = smul.addr %s284, 8
        %s286 = scalar_lea.vmem [#allocation2], %s285
        %p287 = pneg %p49
        %p288 = pneg %p46
        %p289 = pneg %p70
        %p290 = pneg %p67
        %p291 = pneg %p91
        %p292 = pneg %p88
        %p293 = pneg %p112
        %p294 = pneg %p109
        %p295 = pneg %p133
        %p296 = pneg %p130
        %p297 = pneg %p159
        %p298 = pneg %p156
        %s299 = sand.u32 %s146, 1
        %s300 = scalar_lea.sflag [#allocation4], %s299
        %s301 = sand.u32 %s146, 1
        %s302 = smul.addr %s301, 8
        %s303 = scalar_lea.vmem [#allocation8], %s302
        %p304 = pneg %p185
        %p305 = pneg %p182
        %s306 = sand.u32 %s172, 1
        %s307 = scalar_lea.sflag [#allocation10], %s306
        %s308 = sand.u32 %s172, 1
        %s309 = scalar_lea.vmem [#allocation9], %s308
        %v310 = vld [vmem:[%s266] sm:$0xff]
        %v311 = vlaneseq
        %v312 = vand.u32 %v311, 127
        %vm313 = vcmp.lt.s32.totalorder %v312, 32
        %314 = vadd.xlane.f32.xlu0 %v310
        %v315 = vpop.xlane.xlu0 %314
        %v316 = vmul.f32 %v315, 0.03125
        %v317 = vsub.f32 %v310, %v316
        %v318 = vsel %vm313, 1, 0
        %vm319 = vcmp.eq.s32.totalorder %v318, 1
        %v320 = vsel %vm319, %v317, 0.0
        %v321 = vmul.f32 %v320, %v320
        %322 = vadd.xlane.f32.xlu0 %v321
        %v323 = vpop.xlane.xlu0 %322
        %v324 = vmul.f32 %v323, 0.03125
        %v325 = vadd.f32 %v324, 1e-05
        %v326 = vrsqrt.pop %v325
        %v327 = vmul.f32 %v326, %v325
        %v328 = vmul.f32 %v327, %v326
        %v329 = vmul.f32 0.5, %v328
        %v330 = vsub.f32 1.5, %v329
        %v331 = vmul.f32 %v326, %v330
        %vm332 = vweird.f32 %v325
        %vm333 = vweird.f32 %v326
        %vm334 = vmor %vm332, %vm333
        %v335 = vsel %vm334, %v326, %v331
        %v336 = vmul.f32 %v320, %v335
        %v337 = vld [vmem:[#allocation5] sm:$0x1]
        %v339 = vperm.slane %v337, 0
        %v341 = vmul.f32 %v336, %v339
        %v342 = vld [vmem:[%s2] sm:$0x1]
        %v344 = vperm.slane %v342, 0
        %v346 = vadd.f32 %v341, %v344
        %v347 = vlaneseq
        %v348 = vshrl.u32 %v347, 7
        %v349 = vrot.slane %v346, 7
        %v350 = vadd.s32 %v348, 4294967295
        %vm351 = vcmp.ge.s32.totalorder %v350, 0
        %vm352 = vcmp.lt.s32.totalorder %v350, 8
        %vm353 = vmand %vm351, %vm352
        %v354 = vsel %vm353, 1, 0
        %vm355 = vcmp.eq.s32.totalorder %v354, 1
        %v356 = vsel %vm355, %v349, 0.0
        %v357 = vrot.slane %v346, 1
        %v358 = vadd.s32 %v348, 1
        %vm359 = vcmp.ge.s32.totalorder %v358, 0
        %vm360 = vcmp.lt.s32.totalorder %v358, 8
        %vm361 = vmand %vm359, %vm360
        %v362 = vsel %vm361, 1, 0
        %vm363 = vcmp.eq.s32.totalorder %v362, 1
        %v364 = vsel %vm363, %v357, 0.0
        %v365 = vld [vmem:[#allocation7] sm:$0xff]
        %v366 = vld [vmem:[#allocation7 + $0x8] sm:$0xff]
        %v367 = vld [vmem:[#allocation7 + $0x10] sm:$0xff]
        %v368 = vld [vmem:[#allocation7 + $0x18] sm:$0xff]
        %v369 = vld [vmem:[#allocation7 + $0x20] sm:$0xff]
        %v370 = vld [vmem:[#allocation7 + $0x28] sm:$0xff]
        %v371 = vld [vmem:[#allocation7 + $0x30] sm:$0xff]
        %v372 = vld [vmem:[#allocation7 + $0x38] sm:$0xff]
        %v373 = vld [vmem:[#allocation7 + $0x40] sm:$0xff]
        %v374 = vld [vmem:[#allocation7 + $0x48] sm:$0xff]
        %v375 = vld [vmem:[#allocation7 + $0x50] sm:$0xff]
        %v376 = vld [vmem:[#allocation7 + $0x58] sm:$0xff]
        %v377 = vld [vmem:[#allocation7 + $0x60] sm:$0xff]
        %v378 = vld [vmem:[#allocation7 + $0x68] sm:$0xff]
        %v379 = vld [vmem:[#allocation7 + $0x70] sm:$0xff]
        %v380 = vld [vmem:[#allocation7 + $0x78] sm:$0xff]
        %v381 = vld [vmem:[#allocation7 + $0x80] sm:$0xff]
        %v382 = vld [vmem:[#allocation7 + $0x88] sm:$0xff]
        %v383 = vld [vmem:[#allocation7 + $0x90] sm:$0xff]
        %v384 = vld [vmem:[#allocation7 + $0x98] sm:$0xff]
        %v385 = vld [vmem:[#allocation7 + $0xa0] sm:$0xff]
        %v386 = vld [vmem:[#allocation7 + $0xa8] sm:$0xff]
        %v387 = vld [vmem:[#allocation7 + $0xb0] sm:$0xff]
        %v388 = vld [vmem:[#allocation7 + $0xb8] sm:$0xff]
        %v389 = vld [vmem:[#allocation7 + $0xc0] sm:$0xff]
        %v390 = vld [vmem:[#allocation7 + $0xc8] sm:$0xff]
        %v391 = vld [vmem:[#allocation7 + $0xd0] sm:$0xff]
        %v392 = vld [vmem:[#allocation7 + $0xd8] sm:$0xff]
        %v393 = vld [vmem:[#allocation7 + $0xe0] sm:$0xff]
        %v394 = vld [vmem:[#allocation7 + $0xe8] sm:$0xff]
        %v395 = vld [vmem:[#allocation7 + $0xf0] sm:$0xff]
        %v396 = vld [vmem:[#allocation7 + $0xf8] sm:$0xff]
        %v397 = vld [vmem:[#allocation7 + $0x100] sm:$0xff]
        %v398 = vld [vmem:[#allocation7 + $0x108] sm:$0xff]
        %v399 = vld [vmem:[#allocation7 + $0x110] sm:$0xff]
        %v400 = vld [vmem:[#allocation7 + $0x118] sm:$0xff]
        %v401 = vld [vmem:[#allocation7 + $0x120] sm:$0xff]
        %v402 = vld [vmem:[#allocation7 + $0x128] sm:$0xff]
        %v403 = vld [vmem:[#allocation7 + $0x130] sm:$0xff]
        %v404 = vld [vmem:[#allocation7 + $0x138] sm:$0xff]
        %v405 = vld [vmem:[#allocation7 + $0x140] sm:$0xff]
        %v406 = vld [vmem:[#allocation7 + $0x148] sm:$0xff]
        %v407 = vld [vmem:[#allocation7 + $0x150] sm:$0xff]
        %v408 = vld [vmem:[#allocation7 + $0x158] sm:$0xff]
        %v409 = vld [vmem:[#allocation7 + $0x160] sm:$0xff]
        %v410 = vld [vmem:[#allocation7 + $0x168] sm:$0xff]
        %v411 = vld [vmem:[#allocation7 + $0x170] sm:$0xff]
        %v412 = vld [vmem:[#allocation7 + $0x178] sm:$0xff]
        %v413 = vld [vmem:[%s4] sm:$0x1]
        %v415 = vperm.slane %v413, 0
        %417 = vmatpush.msra.mxu0 %v380
        %418 = vmatpush.msra.mxu0 %v379
        %419 = vmatpush.msra.mxu0 %v378
        %420 = vmatpush.msra.mxu0 %v377
        %421 = vmatpush.msra.mxu0 %v376
        %422 = vmatpush.msra.mxu0 %v375
        %423 = vmatpush.msra.mxu0 %v374
        %424 = vmatpush.msra.mxu0 %v373
        %425 = vmatpush.msra.mxu0 %v372
        %426 = vmatpush.msra.mxu0 %v371
        %427 = vmatpush.msra.mxu0 %v370
        %428 = vmatpush.msra.mxu0 %v369
        %429 = vmatpush.msra.mxu0 %v368
        %430 = vmatpush.msra.mxu0 %v367
        %431 = vmatpush.msra.mxu0 %v366
        %432 = vmatpush.msra.mxu0 %v365
        %433 = vmatmul.f32.gmra.mxu0 %v356
        %v434 = vpop.f32.mrf.mxu0
        %v435 = vadd.f32 %v415, %v434
        %436 = vdwg.mxu0
        %437 = vmatpush.msra.mxu0 %v396
        %438 = vmatpush.msra.mxu0 %v395
        %439 = vmatpush.msra.mxu0 %v394
        %440 = vmatpush.msra.mxu0 %v393
        %441 = vmatpush.msra.mxu0 %v392
        %442 = vmatpush.msra.mxu0 %v391
        %443 = vmatpush.msra.mxu0 %v390
        %444 = vmatpush.msra.mxu0 %v389
        %445 = vmatpush.msra.mxu0 %v388
        %446 = vmatpush.msra.mxu0 %v387
        %447 = vmatpush.msra.mxu0 %v386
        %448 = vmatpush.msra.mxu0 %v385
        %449 = vmatpush.msra.mxu0 %v384
        %450 = vmatpush.msra.mxu0 %v383
        %451 = vmatpush.msra.mxu0 %v382
        %452 = vmatpush.msra.mxu0 %v381
        %453 = vmatmul.f32.gmra.mxu0 %v346
        %v454 = vpop.f32.mrf.mxu0
        %v455 = vadd.f32 %v435, %v454
        %456 = vdwg.mxu0
        %457 = vmatpush.msra.mxu0 %v412
        %458 = vmatpush.msra.mxu0 %v411
        %459 = vmatpush.msra.mxu0 %v410
        %460 = vmatpush.msra.mxu0 %v409
        %461 = vmatpush.msra.mxu0 %v408
        %462 = vmatpush.msra.mxu0 %v407
        %463 = vmatpush.msra.mxu0 %v406
        %464 = vmatpush.msra.mxu0 %v405
        %465 = vmatpush.msra.mxu0 %v404
        %466 = vmatpush.msra.mxu0 %v403
        %467 = vmatpush.msra.mxu0 %v402
        %468 = vmatpush.msra.mxu0 %v401
        %469 = vmatpush.msra.mxu0 %v400
        %470 = vmatpush.msra.mxu0 %v399
        %471 = vmatpush.msra.mxu0 %v398
        %472 = vmatpush.msra.mxu0 %v397
        %473 = vmatmul.f32.gmra.mxu0 %v364
        %v474 = vpop.f32.mrf.mxu0
        %v475 = vadd.f32 %v455, %v474
        %476 = vdwg.mxu0
        %v477 = vmax.f32 %v475, 0.0
        %v478 = vadd.f32 %v477, %v310
        %479 = vst [vmem:[%s303] sm:$0xff] %v478
        %v480 = vrot.slane %v477, 4
        %v481 = vmax.f32 %v477, %v480
        %v482 = vrot.slane %v481, 2
        %v483 = vmax.f32 %v481, %v482
        %v484 = vrot.slane %v483, 1
        %v485 = vmax.f32 %v483, %v484
        %486 = vst [vmem:[%s309] sm:$0x1] %v485
        %s487 = sand.u32 %s146, 1
        %s488 = scalar_lea.sflag [#allocation4], %s487
        %s489 = sand.u32 %s146, 1
        %s490 = smul.addr %s489, 8
        %s491 = scalar_lea.vmem [#allocation8], %s490
        %s492 = sand.u32 %s172, 1
        %s493 = scalar_lea.sflag [#allocation10], %s492
        %s494 = sand.u32 %s172, 1
        %s495 = scalar_lea.vmem [#allocation9], %s494
        // Predicated region
        $region53: #{tpu_custom_call.1} parent=39 // pred_check
          %p496 = pneg %p156
        $region54: #{tpu_custom_call.1} parent=39 // pred_check_branch
          %498 = sbr.rel (%p496) target = $region56
        $region55: #{tpu_custom_call.1} parent=39 // pred_region
          %500 = vsyncadd %s488, 0
          %s501 = smul.addr %s28, 8
          %s502 = scalar_lea.hbm %s5, %s501
          %s504 = sshll.u32 %s491, 4
          %s505 = int_to_ptr.vmem [resolvable:$true] %s504
          %s506 = sshll.u32 %s502, 4
          %s507 = int_to_ptr.hbm [resolvable:$true] %s506
          %509 = dma.vmem_to_hbm [thread:$0]  %s505, 128, %s507, %s488
        $region56: #{tpu_custom_call.1} parent=39 // pred_fallthru
          _
        // Predicated region
        $region57: #{tpu_custom_call.1} parent=39 // pred_check
          %p510 = pneg %p182
        $region58: #{tpu_custom_call.1} parent=39 // pred_check_branch
          %512 = sbr.rel (%p510) target = $region60
        $region59: #{tpu_custom_call.1} parent=39 // pred_region
          %514 = vsyncadd %s493, 0
          %s515 = scalar_lea.hbm %s6, %s28
          %s517 = sshll.u32 %s495, 4
          %s518 = int_to_ptr.vmem [resolvable:$true] %s517
          %s519 = sshll.u32 %s515, 4
          %s520 = int_to_ptr.hbm [resolvable:$true] %s519
          %522 = dma.vmem_to_hbm [thread:$0]  %s518, 16, %s520, %s493
        $region60: #{tpu_custom_call.1} parent=39 // pred_fallthru
          _
      $region40: #{tpu_custom_call.1} parent=5 // pred_fallthru
        _
      %p523 = scmp.le.s32.totalorder 2, %s23
      // Predicated region
      $region61: #{tpu_custom_call.1} parent=5 // pred_check
        %p524 = pneg %p523
      $region62: #{tpu_custom_call.1} parent=5 // pred_check_branch
        %526 = sbr.rel (%p524) target = $region64
      $region63: #{tpu_custom_call.1} parent=5 // pred_region
        %s527 = ssub.s32 %s23, 2
        // Predicated region
        $region65: #{tpu_custom_call.1} parent=63 // pred_check
          %p528 = pneg %p162
        $region66: #{tpu_custom_call.1} parent=63 // pred_check_branch
          %530 = sbr.rel (%p528) target = $region68
        $region67: #{tpu_custom_call.1} parent=63 // pred_region
          %s531 = sand.u32 %s147, 1
          %s532 = scalar_lea.sflag [#allocation4], %s531
          %s533 = sand.u32 %s147, 1
          %s534 = smul.addr %s533, 8
          %s535 = scalar_lea.vmem [#allocation8], %s534
          %537 = dma.done %s532, 128
        $region68: #{tpu_custom_call.1} parent=63 // pred_fallthru
          _
        // Predicated region
        $region69: #{tpu_custom_call.1} parent=63 // pred_check
          %p538 = pneg %p188
        $region70: #{tpu_custom_call.1} parent=63 // pred_check_branch
          %540 = sbr.rel (%p538) target = $region72
        $region71: #{tpu_custom_call.1} parent=63 // pred_region
          %s541 = sand.u32 %s173, 1
          %s542 = scalar_lea.sflag [#allocation10], %s541
          %s543 = sand.u32 %s173, 1
          %s544 = scalar_lea.vmem [#allocation9], %s543
          %546 = dma.done %s542, 16
        $region72: #{tpu_custom_call.1} parent=63 // pred_fallthru
          _
      $region64: #{tpu_custom_call.1} parent=5 // pred_fallthru
        _
    $region6: #{tpu_custom_call.1} parent=1 // loop_footer
      %s27 = sadd.s32 1, %s23
    $region7: #{tpu_custom_call.1} parent=1 // loop_footer_branch
      %22 = sbr.rel target = $region3
    $region8: #{tpu_custom_call.1} parent=1 // loop_exit
      _
    %547 = vsyncpa [#allocation3], 1
    %s548 = scalar_lea.sflag [#allocation3], 1
    %549 = vsyncpa %s548, 1
    %550 = vsyncpa [#allocation6], 1
    %551 = vsyncpa [#allocation4], 1
    %s552 = scalar_lea.sflag [#allocation4], 1
    %553 = vsyncpa %s552, 1
    %554 = vsyncpa [#allocation10], 1
    %s555 = scalar_lea.sflag [#allocation10], 1
    %556 = vsyncpa %s555, 1

</llo_original>
